<compile_context>
chip_gen: v6e
topology: v6e:2x2x1
jax: 0.10.0
libtpu: 0.0.40
codegen_flags: <defaults>
</compile_context>

<pallas_src>
import functools

import jax
import jax.numpy as jnp
from jax.experimental import pallas as pl
from jax.experimental.pallas import tpu as pltpu


def _select_tb(batch: int) -> int:
    """Pick the batch tile size (static, from the traced shape).

    - batch <= 512: a single full-extent tile (block dim == array dim is legal
      even when not a multiple of 8).
    - batch  > 512: MXU-aligned multiple of 512, capped at 2048, and capped at
      ~batch/2 so large batches always give >= 2 grid steps (v7x 2-TC sharding).
    """
    if batch <= 512:
        return batch
    tb = 512 * max(1, (batch // 2) // 512)   # ~batch/2 rounded down to 512
    return min(2048, tb)


def _actor_kernel(x_ref, w1_ref, b1_ref, w2_ref, b2_ref, w3_ref, b3_ref, o_ref,
                  *, compute_dtype):
    # Fused 3-layer MLP on one batch tile.  Matmuls hit the MXU with f32
    # accumulation; bias add / ReLU / tanh run in f32 on the VPU/EUP.
    # The streamed state arrives in f32 and is cast here (free-ish VPU cast;
    # halves the input-side HBM bytes vs a wrapper-side cast pass).
    x = x_ref[...].astype(compute_dtype)
    h1 = jnp.dot(x, w1_ref[...], preferred_element_type=jnp.float32) + b1_ref[...]
    h1 = jnp.maximum(h1, 0.0)                         # ReLU (+ Dropout(p=0) == id)
    h2 = jnp.dot(h1.astype(compute_dtype), w2_ref[...],
                 preferred_element_type=jnp.float32) + b2_ref[...]
    h2 = jnp.maximum(h2, 0.0)                         # ReLU (+ Dropout(p=0) == id)
    out = jnp.dot(h2.astype(compute_dtype), w3_ref[...],
                  preferred_element_type=jnp.float32) + b3_ref[...]
    o_ref[...] = jnp.tanh(out).astype(o_ref.dtype)


@functools.partial(jax.jit, static_argnames=("use_bf16",))
def actor_forward(state, w1, b1, w2, b2, w3, b3, *, use_bf16=True):
    """state: (B, n_states) f32; weights pre-transposed to (in, out); biases (1, out)."""
    batch, n_states = state.shape
    n_actions = w3.shape[1]

    compute_dtype = jnp.bfloat16 if use_bf16 else jnp.float32

    # Weights are tiny (<20 KB): cast once here; they stay resident in VMEM
    # across the whole grid.  The large streamed state stays f32 (cast in-kernel).
    w1c, w2c, w3c = (w.astype(compute_dtype) for w in (w1, w2, w3))
    b1f, b2f, b3f = (b.astype(jnp.float32) for b in (b1, b2, b3))

    tb = _select_tb(batch)
    grid = (pl.cdiv(batch, tb),)   # partial tail block: stores are masked by Pallas

    # Resident operand: same block every grid step -> loaded once, kept in VMEM.
    resident = lambda a: pl.BlockSpec(a.shape, lambda i: (0,) * a.ndim)

    out = pl.pallas_call(
        functools.partial(_actor_kernel, compute_dtype=compute_dtype),
        out_shape=jax.ShapeDtypeStruct((batch, n_actions), jnp.float32),
        grid_spec=pltpu.PrefetchScalarGridSpec(
            num_scalar_prefetch=0,
            grid=grid,
            in_specs=[
                pl.BlockSpec((tb, n_states), lambda i: (i, 0)),   # streamed state tile
                resident(w1c), resident(b1f),
                resident(w2c), resident(b2f),
                resident(w3c), resident(b3f),
            ],
            out_specs=pl.BlockSpec((tb, n_actions), lambda i: (i, 0)),
        ),
        compiler_params=pltpu.CompilerParams(
            dimension_semantics=("parallel",)),   # v7x: shard batch tiles across 2 TCs
    )(state, w1c, b1f, w2c, b2f, w3c, b3f)
    return out


def init_actor_params(key, n_states, n_actions, hidden1_size, hidden2_size):
    """Deterministic init mirroring Actor.reset_params():
       hidden weights ~ U(-1/sqrt(out_features), +1/sqrt(out_features))
       output weights ~ U(-0.003, 0.003); biases use PyTorch Linear default
       U(-1/sqrt(fan_in), +1/sqrt(fan_in)). Weights returned as (in, out)."""
    k = jax.random.split(key, 6)

    def uniform(k_, shape, lim):
        return jax.random.uniform(k_, shape, jnp.float32, -lim, lim)

    lim1 = 1.0 / jnp.sqrt(jnp.float32(hidden1_size))   # size()[0] == out_features
    lim2 = 1.0 / jnp.sqrt(jnp.float32(hidden2_size))
    lim_out = 0.003

    w1 = uniform(k[0], (n_states, hidden1_size), lim1)
    b1 = uniform(k[1], (1, hidden1_size), 1.0 / jnp.sqrt(jnp.float32(n_states)))
    w2 = uniform(k[2], (hidden1_size, hidden2_size), lim2)
    b2 = uniform(k[3], (1, hidden2_size), 1.0 / jnp.sqrt(jnp.float32(hidden1_size)))
    w3 = uniform(k[4], (hidden2_size, n_actions), lim_out)
    b3 = uniform(k[5], (1, n_actions), 1.0 / jnp.sqrt(jnp.float32(hidden2_size)))
    return w1, b1, w2, b2, w3, b3


def actor_forward_ref(state, w1, b1, w2, b2, w3, b3, dtype=jnp.float32):
    h1 = jnp.maximum(
        jnp.dot(state.astype(dtype), w1.astype(dtype),
                preferred_element_type=jnp.float32) + b1, 0.0)
    h2 = jnp.maximum(
        jnp.dot(h1.astype(dtype), w2.astype(dtype),
                preferred_element_type=jnp.float32) + b2, 0.0)
    return jnp.tanh(
        jnp.dot(h2.astype(dtype), w3.astype(dtype),
                preferred_element_type=jnp.float32) + b3)


if __name__ == "__main__":
    # Shapes consistent with the module (e.g. Tennis env: 24 states, 2 actions).
    n_states = 24
    n_actions = 2
    hidden1_size = 64
    hidden2_size = 32

    key = jax.random.PRNGKey(0)
    k_params, k_state = jax.random.split(key)
    params = init_actor_params(k_params, n_states, n_actions, hidden1_size, hidden2_size)

    # Case 1: ragged batch of 520 -> two grid tiles (512 + masked partial tail),
    # bf16 MXU path (exercises multi-tile streaming + masked tail stores).
    state = jax.random.normal(k_state, (520, n_states), jnp.float32)
    out_bf16 = jax.block_until_ready(actor_forward(state, *params, use_bf16=True))
    assert out_bf16.shape == (520, n_actions), out_bf16.shape
    assert bool(jnp.all(jnp.isfinite(out_bf16))), "non-finite outputs"
    ref_bf16 = actor_forward_ref(state, *params, dtype=jnp.bfloat16)
    ref_f32 = actor_forward_ref(state, *params, dtype=jnp.float32)
    assert jnp.allclose(out_bf16, ref_bf16, atol=1e-4, rtol=1e-3), "bf16 kernel vs bf16 ref"
    assert jnp.allclose(out_bf16, ref_f32, atol=3e-2, rtol=3e-2), "bf16 kernel vs f32 ref"

    # Case 2: small batch (single full-extent tile), f32 path, tight tolerance
    # (guards the no-pad / masked-tail path with precise numerics).
    state_small = jax.random.normal(jax.random.PRNGKey(1), (8, n_states), jnp.float32)
    out_f32 = jax.block_until_ready(actor_forward(state_small, *params, use_bf16=False))
    assert out_f32.shape == (8, n_actions), out_f32.shape
    ref_small = actor_forward_ref(state_small, *params, dtype=jnp.float32)
    assert jnp.allclose(out_f32, ref_small, atol=1e-4, rtol=1e-3), "f32 kernel vs f32 ref"

    print("KERNEL_OK")
</pallas_src>

<mosaic_0001>
module attributes {stable_mosaic.version = 11 : i64} {
  func.func @_actor_kernel(%arg0: i32, %arg1: memref<512x24xf32, #tpu.memory_space<vmem>>, %arg2: memref<24x64xbf16, #tpu.memory_space<vmem>>, %arg3: memref<1x64xf32, #tpu.memory_space<vmem>>, %arg4: memref<64x32xbf16, #tpu.memory_space<vmem>>, %arg5: memref<1x32xf32, #tpu.memory_space<vmem>>, %arg6: memref<32x2xbf16, #tpu.memory_space<vmem>>, %arg7: memref<1x2xf32, #tpu.memory_space<vmem>>, %arg8: memref<512x2xf32, #tpu.memory_space<vmem>>) attributes {dimension_semantics = [#tpu.dimension_semantics<parallel>], iteration_bounds = array<i64: 2>, scalar_prefetch = 0 : i64, scratch_operands = 0 : i64, tpu.core_type = #tpu.core_type<tc>, window_params = [{transform_indices = @transform_0, window_bounds = array<i64: 512, 24>}, {pipeline_mode = #tpu.pipeline_mode<synchronous>, transform_indices = @transform_1, window_bounds = array<i64: 24, 64>}, {pipeline_mode = #tpu.pipeline_mode<synchronous>, transform_indices = @transform_2, window_bounds = array<i64: 1, 64>}, {pipeline_mode = #tpu.pipeline_mode<synchronous>, transform_indices = @transform_3, window_bounds = array<i64: 64, 32>}, {pipeline_mode = #tpu.pipeline_mode<synchronous>, transform_indices = @transform_4, window_bounds = array<i64: 1, 32>}, {pipeline_mode = #tpu.pipeline_mode<synchronous>, transform_indices = @transform_5, window_bounds = array<i64: 32, 2>}, {pipeline_mode = #tpu.pipeline_mode<synchronous>, transform_indices = @transform_6, window_bounds = array<i64: 1, 2>}, {transform_indices = @transform_7, window_bounds = array<i64: 512, 2>}]} {
    %c0 = arith.constant 0 : index
    %c0_0 = arith.constant 0 : index
    %0 = vector.load %arg1[%c0, %c0_0] : memref<512x24xf32, #tpu.memory_space<vmem>>, vector<512x24xf32>
    %1 = arith.truncf %0 : vector<512x24xf32> to vector<512x24xbf16>
    %c0_1 = arith.constant 0 : index
    %c0_2 = arith.constant 0 : index
    %2 = vector.load %arg2[%c0_1, %c0_2] : memref<24x64xbf16, #tpu.memory_space<vmem>>, vector<24x64xbf16>
    %cst = arith.constant dense<0.000000e+00> : vector<512x64xf32>
    %3 = tpu.matmul %1, %2, %cst {dimension_numbers = #tpu.dot_dimension_numbers<[1], [0], [0], [1], [0, 0, 1, 1], [], []>} : vector<512x24xbf16>, vector<24x64xbf16>, vector<512x64xf32> -> vector<512x64xf32>
    %c0_3 = arith.constant 0 : index
    %c0_4 = arith.constant 0 : index
    %4 = vector.load %arg3[%c0_3, %c0_4] : memref<1x64xf32, #tpu.memory_space<vmem>>, vector<1x64xf32>
    %5 = vector.broadcast %4 : vector<1x64xf32> to vector<512x64xf32>
    %6 = arith.addf %3, %5 : vector<512x64xf32>
    %cst_5 = arith.constant 0.000000e+00 : f32
    %7 = vector.broadcast %cst_5 : f32 to vector<512x64xf32>
    %8 = arith.maximumf %6, %7 : vector<512x64xf32>
    %9 = arith.truncf %8 : vector<512x64xf32> to vector<512x64xbf16>
    %c0_6 = arith.constant 0 : index
    %c0_7 = arith.constant 0 : index
    %10 = vector.load %arg4[%c0_6, %c0_7] : memref<64x32xbf16, #tpu.memory_space<vmem>>, vector<64x32xbf16>
    %cst_8 = arith.constant dense<0.000000e+00> : vector<512x32xf32>
    %11 = tpu.matmul %9, %10, %cst_8 {dimension_numbers = #tpu.dot_dimension_numbers<[1], [0], [0], [1], [0, 0, 1, 1], [], []>} : vector<512x64xbf16>, vector<64x32xbf16>, vector<512x32xf32> -> vector<512x32xf32>
    %c0_9 = arith.constant 0 : index
    %c0_10 = arith.constant 0 : index
    %12 = vector.load %arg5[%c0_9, %c0_10] : memref<1x32xf32, #tpu.memory_space<vmem>>, vector<1x32xf32>
    %13 = vector.broadcast %12 : vector<1x32xf32> to vector<512x32xf32>
    %14 = arith.addf %11, %13 : vector<512x32xf32>
    %cst_11 = arith.constant 0.000000e+00 : f32
    %15 = vector.broadcast %cst_11 : f32 to vector<512x32xf32>
    %16 = arith.maximumf %14, %15 : vector<512x32xf32>
    %17 = arith.truncf %16 : vector<512x32xf32> to vector<512x32xbf16>
    %c0_12 = arith.constant 0 : index
    %c0_13 = arith.constant 0 : index
    %18 = vector.load %arg6[%c0_12, %c0_13] : memref<32x2xbf16, #tpu.memory_space<vmem>>, vector<32x2xbf16>
    %cst_14 = arith.constant dense<0.000000e+00> : vector<512x2xf32>
    %19 = tpu.matmul %17, %18, %cst_14 {dimension_numbers = #tpu.dot_dimension_numbers<[1], [0], [0], [1], [0, 0, 1, 1], [], []>} : vector<512x32xbf16>, vector<32x2xbf16>, vector<512x2xf32> -> vector<512x2xf32>
    %c0_15 = arith.constant 0 : index
    %c0_16 = arith.constant 0 : index
    %20 = vector.load %arg7[%c0_15, %c0_16] : memref<1x2xf32, #tpu.memory_space<vmem>>, vector<1x2xf32>
    %21 = vector.broadcast %20 : vector<1x2xf32> to vector<512x2xf32>
    %22 = arith.addf %19, %21 : vector<512x2xf32>
    %23 = math.tanh %22 : vector<512x2xf32>
    %c0_17 = arith.constant 0 : index
    %c0_18 = arith.constant 0 : index
    %24 = vector.load %arg8[%c0_17, %c0_18] : memref<512x2xf32, #tpu.memory_space<vmem>>, vector<512x2xf32>
    tpu.vector_store %arg8[%c0_17, %c0_18], %23 {strides = array<i32>} : memref<512x2xf32, #tpu.memory_space<vmem>>, vector<512x2xf32>,
    return
  }
  func.func @transform_0(%arg0: i32) -> (i32, i32) {
    %c0_i32 = arith.constant 0 : i32
    %c0_i32_0 = arith.constant 0 : i32
    return %arg0, %c0_i32 : i32, i32
  }
  func.func @transform_1(%arg0: i32) -> (i32, i32) {
    %c0_i32 = arith.constant 0 : i32
    %c0_i32_0 = arith.constant 0 : i32
    %c0_i32_1 = arith.constant 0 : i32
    return %c0_i32, %c0_i32_0 : i32, i32
  }
  func.func @transform_2(%arg0: i32) -> (i32, i32) {
    %c0_i32 = arith.constant 0 : i32
    %c0_i32_0 = arith.constant 0 : i32
    %c0_i32_1 = arith.constant 0 : i32
    return %c0_i32, %c0_i32_0 : i32, i32
  }
  func.func @transform_3(%arg0: i32) -> (i32, i32) {
    %c0_i32 = arith.constant 0 : i32
    %c0_i32_0 = arith.constant 0 : i32
    %c0_i32_1 = arith.constant 0 : i32
    return %c0_i32, %c0_i32_0 : i32, i32
  }
  func.func @transform_4(%arg0: i32) -> (i32, i32) {
    %c0_i32 = arith.constant 0 : i32
    %c0_i32_0 = arith.constant 0 : i32
    %c0_i32_1 = arith.constant 0 : i32
    return %c0_i32, %c0_i32_0 : i32, i32
  }
  func.func @transform_5(%arg0: i32) -> (i32, i32) {
    %c0_i32 = arith.constant 0 : i32
    %c0_i32_0 = arith.constant 0 : i32
    %c0_i32_1 = arith.constant 0 : i32
    return %c0_i32, %c0_i32_0 : i32, i32
  }
  func.func @transform_6(%arg0: i32) -> (i32, i32) {
    %c0_i32 = arith.constant 0 : i32
    %c0_i32_0 = arith.constant 0 : i32
    %c0_i32_1 = arith.constant 0 : i32
    return %c0_i32, %c0_i32_0 : i32, i32
  }
  func.func @transform_7(%arg0: i32) -> (i32, i32) {
    %c0_i32 = arith.constant 0 : i32
    %c0_i32_0 = arith.constant 0 : i32
    return %arg0, %c0_i32 : i32, i32
  }
}

</mosaic_0001>

<llo_original>
// kernel: actor_forward.1
$region0: #{actor_forward.1}
  #allocation0 [shape = 'u32[]', space=smem, size = 0x4, offset = 0x4, fixed_abs, tag = 'smem constant byte address 0x4 - core index']
  #allocation1 [shape = 'u32[144,128]{1,0:T(1,128)}', space=vmem, size = 0x12000, scoped, tag = 'internal scratch']
  %s0 = inlined_call_operand.vmem [shape: f32[520,24], index: 0, kind: input, shape index: {}]
  %s1 = inlined_call_operand.vmem [shape: bf16[24,64], index: 1, kind: input, shape index: {}]
  %s2 = inlined_call_operand.vmem [shape: f32[1,64], index: 2, kind: input, shape index: {}]
  %s3 = inlined_call_operand.vmem [shape: bf16[64,32], index: 3, kind: input, shape index: {}]
  %s4 = inlined_call_operand.vmem [shape: f32[1,32], index: 4, kind: input, shape index: {}]
  %s5 = inlined_call_operand.vmem [shape: bf16[32,2], index: 5, kind: input, shape index: {}]
  %s6 = inlined_call_operand.vmem [shape: f32[1,2], index: 6, kind: input, shape index: {}]
  %s7 = inlined_call_operand.vmem [shape: f32[520,2], index: 7, kind: output, shape index: {}]
  %s8 = sld [smem:[#allocation0]]
  $region109: #{actor_forward.1} parent=0
    _
  %s10 = ssub.s32 1, %s8
  %s11 = scalar_select 0, %s10, %s8
  $region1: #{actor_forward.1} parent=0
    #allocation2 [shape = 'u8[524288]{0}', space=vmem, size = 0x80000, scoped, tag = 'output window, operand 0']
    loop: start=0, step=1, limit=4
    $region2: #{actor_forward.1} parent=1 // loop_pre_header
      _
    $region3: #{actor_forward.1} parent=1 // loop_header
      %s13 = sphi 0, %s17
      %p14 = scmp.ge.s32.totalorder %s13, 4
      %s23 = sphi 0, %s25
      %s26 = sphi 0, %s23
      %s27 = sphi 0, %s26
      %s43 = sphi 0, %s27
      %s47 = sphi 0, %s47
      %s49 = sphi 0, %s47
      %s50 = sphi 0, %s49
      %s64 = sphi 0, %s50
      %s68 = sphi 0, %s68
      %s70 = sphi 0, %s68
      %s71 = sphi 0, %s70
      %s85 = sphi 0, %s71
      %s89 = sphi 0, %s89
      %s91 = sphi 0, %s89
      %s92 = sphi 0, %s91
      %s106 = sphi 0, %s92
      %s110 = sphi 0, %s110
      %s112 = sphi 0, %s110
      %s113 = sphi 0, %s112
      %s127 = sphi 0, %s113
      %s131 = sphi 0, %s131
      %s133 = sphi 0, %s131
      %s134 = sphi 0, %s133
      %s148 = sphi 0, %s134
      %s152 = sphi 0, %s152
      %s154 = sphi 0, %s152
      %s155 = sphi 0, %s154
      %s169 = sphi 0, %s155
      %s175 = sphi 0, %s177
      %s178 = sphi 0, %s175
      %s179 = sphi 0, %s178
      %s195 = sphi 0, %s179
    $region4: #{actor_forward.1} parent=1 // loop_header_branch
      %16 = sbr.rel (%p14) target = $region8
    $region5: #{actor_forward.1} parent=1 // loop_body
      %s18 = ssub.s32 %s13, 1
      %s19 = ssub.s32 %s13, 2
      %s20 = sadd.s32 %s13, 1
      %s21 = ssub.s32 %s13, %s20
      %p22 = scmp.eq.s32.totalorder %s21, 0
      %s24 = sadd.s32 %s23, 1
      %s25 = scalar_select %p22, %s23, %s24
      %p28 = pneg %p22
      %p29 = scmp.eq.s32.totalorder %s13, 1
      %p30 = por %p28, %p29
      %p31 = scmp.ne.s32.totalorder %s23, %s26
      %p32 = scmp.eq.s32.totalorder %s13, 0
      %p33 = por %p31, %p32
      %p34 = scmp.ne.s32.totalorder %s23, %s26
      %p35 = scmp.eq.s32.totalorder %s18, 1
      %p36 = por %p34, %p35
      %p37 = scmp.ne.s32.totalorder %s26, %s27
      %p38 = scmp.eq.s32.totalorder %s18, 0
      %p39 = por %p37, %p38
      %p40 = scmp.ne.s32.totalorder %s26, %s27
      %p41 = scmp.eq.s32.totalorder %s19, 1
      %p42 = por %p40, %p41
      %p44 = scmp.ne.s32.totalorder %s27, %s43
      %p45 = scmp.eq.s32.totalorder %s19, 0
      %p46 = por %p44, %p45
      %s48 = sadd.s32 %s47, 1
      %p51 = scmp.eq.s32.totalorder %s13, 1
      %p52 = scmp.ne.s32.totalorder %s47, %s49
      %p53 = scmp.eq.s32.totalorder %s13, 0
      %p54 = por %p52, %p53
      %p55 = scmp.ne.s32.totalorder %s47, %s49
      %p56 = scmp.eq.s32.totalorder %s18, 1
      %p57 = por %p55, %p56
      %p58 = scmp.ne.s32.totalorder %s49, %s50
      %p59 = scmp.eq.s32.totalorder %s18, 0
      %p60 = por %p58, %p59
      %p61 = scmp.ne.s32.totalorder %s49, %s50
      %p62 = scmp.eq.s32.totalorder %s19, 1
      %p63 = por %p61, %p62
      %p65 = scmp.ne.s32.totalorder %s50, %s64
      %p66 = scmp.eq.s32.totalorder %s19, 0
      %p67 = por %p65, %p66
      %s69 = sadd.s32 %s68, 1
      %p72 = scmp.eq.s32.totalorder %s13, 1
      %p73 = scmp.ne.s32.totalorder %s68, %s70
      %p74 = scmp.eq.s32.totalorder %s13, 0
      %p75 = por %p73, %p74
      %p76 = scmp.ne.s32.totalorder %s68, %s70
      %p77 = scmp.eq.s32.totalorder %s18, 1
      %p78 = por %p76, %p77
      %p79 = scmp.ne.s32.totalorder %s70, %s71
      %p80 = scmp.eq.s32.totalorder %s18, 0
      %p81 = por %p79, %p80
      %p82 = scmp.ne.s32.totalorder %s70, %s71
      %p83 = scmp.eq.s32.totalorder %s19, 1
      %p84 = por %p82, %p83
      %p86 = scmp.ne.s32.totalorder %s71, %s85
      %p87 = scmp.eq.s32.totalorder %s19, 0
      %p88 = por %p86, %p87
      %s90 = sadd.s32 %s89, 1
      %p93 = scmp.eq.s32.totalorder %s13, 1
      %p94 = scmp.ne.s32.totalorder %s89, %s91
      %p95 = scmp.eq.s32.totalorder %s13, 0
      %p96 = por %p94, %p95
      %p97 = scmp.ne.s32.totalorder %s89, %s91
      %p98 = scmp.eq.s32.totalorder %s18, 1
      %p99 = por %p97, %p98
      %p100 = scmp.ne.s32.totalorder %s91, %s92
      %p101 = scmp.eq.s32.totalorder %s18, 0
      %p102 = por %p100, %p101
      %p103 = scmp.ne.s32.totalorder %s91, %s92
      %p104 = scmp.eq.s32.totalorder %s19, 1
      %p105 = por %p103, %p104
      %p107 = scmp.ne.s32.totalorder %s92, %s106
      %p108 = scmp.eq.s32.totalorder %s19, 0
      %p109 = por %p107, %p108
      %s111 = sadd.s32 %s110, 1
      %p114 = scmp.eq.s32.totalorder %s13, 1
      %p115 = scmp.ne.s32.totalorder %s110, %s112
      %p116 = scmp.eq.s32.totalorder %s13, 0
      %p117 = por %p115, %p116
      %p118 = scmp.ne.s32.totalorder %s110, %s112
      %p119 = scmp.eq.s32.totalorder %s18, 1
      %p120 = por %p118, %p119
      %p121 = scmp.ne.s32.totalorder %s112, %s113
      %p122 = scmp.eq.s32.totalorder %s18, 0
      %p123 = por %p121, %p122
      %p124 = scmp.ne.s32.totalorder %s112, %s113
      %p125 = scmp.eq.s32.totalorder %s19, 1
      %p126 = por %p124, %p125
      %p128 = scmp.ne.s32.totalorder %s113, %s127
      %p129 = scmp.eq.s32.totalorder %s19, 0
      %p130 = por %p128, %p129
      %s132 = sadd.s32 %s131, 1
      %p135 = scmp.eq.s32.totalorder %s13, 1
      %p136 = scmp.ne.s32.totalorder %s131, %s133
      %p137 = scmp.eq.s32.totalorder %s13, 0
      %p138 = por %p136, %p137
      %p139 = scmp.ne.s32.totalorder %s131, %s133
      %p140 = scmp.eq.s32.totalorder %s18, 1
      %p141 = por %p139, %p140
      %p142 = scmp.ne.s32.totalorder %s133, %s134
      %p143 = scmp.eq.s32.totalorder %s18, 0
      %p144 = por %p142, %p143
      %p145 = scmp.ne.s32.totalorder %s133, %s134
      %p146 = scmp.eq.s32.totalorder %s19, 1
      %p147 = por %p145, %p146
      %p149 = scmp.ne.s32.totalorder %s134, %s148
      %p150 = scmp.eq.s32.totalorder %s19, 0
      %p151 = por %p149, %p150
      %s153 = sadd.s32 %s152, 1
      %p156 = scmp.eq.s32.totalorder %s13, 1
      %p157 = scmp.ne.s32.totalorder %s152, %s154
      %p158 = scmp.eq.s32.totalorder %s13, 0
      %p159 = por %p157, %p158
      %p160 = scmp.ne.s32.totalorder %s152, %s154
      %p161 = scmp.eq.s32.totalorder %s18, 1
      %p162 = por %p160, %p161
      %p163 = scmp.ne.s32.totalorder %s154, %s155
      %p164 = scmp.eq.s32.totalorder %s18, 0
      %p165 = por %p163, %p164
      %p166 = scmp.ne.s32.totalorder %s154, %s155
      %p167 = scmp.eq.s32.totalorder %s19, 1
      %p168 = por %p166, %p167
      %p170 = scmp.ne.s32.totalorder %s155, %s169
      %p171 = scmp.eq.s32.totalorder %s19, 0
      %p172 = por %p170, %p171
      %s173 = ssub.s32 %s13, %s20
      %p174 = scmp.eq.s32.totalorder %s173, 0
      %s176 = sadd.s32 %s175, 1
      %s177 = scalar_select %p174, %s175, %s176
      %p180 = pneg %p174
      %p181 = scmp.eq.s32.totalorder %s13, 1
      %p182 = por %p180, %p181
      %p183 = scmp.ne.s32.totalorder %s175, %s178
      %p184 = scmp.eq.s32.totalorder %s13, 0
      %p185 = por %p183, %p184
      %p186 = scmp.ne.s32.totalorder %s175, %s178
      %p187 = scmp.eq.s32.totalorder %s18, 1
      %p188 = por %p186, %p187
      %p189 = scmp.ne.s32.totalorder %s178, %s179
      %p190 = scmp.eq.s32.totalorder %s18, 0
      %p191 = por %p189, %p190
      %p192 = scmp.ne.s32.totalorder %s178, %s179
      %p193 = scmp.eq.s32.totalorder %s19, 1
      %p194 = por %p192, %p193
      %p196 = scmp.ne.s32.totalorder %s179, %s195
      %p197 = scmp.eq.s32.totalorder %s19, 0
      %p198 = por %p196, %p197
      %p199 = scmp.le.s32.totalorder 1, %s13
      %p200 = scmp.lt.s32.totalorder %s13, 3
      %p201 = pnand %p199, %p200
      %p202 = pneg %p201
      // Predicated region
      $region9: #{actor_forward.1} parent=5 // pred_check
        _
      $region10: #{actor_forward.1} parent=5 // pred_check_branch
        %204 = sbr.rel (%p201) target = $region12
      $region11: #{actor_forward.1} parent=5 // pred_region
        %s205 = ssub.s32 %s13, 1
        // Predicated region
        $region13: #{actor_forward.1} parent=11 // pred_check
          %p206 = pneg %p60
        $region14: #{actor_forward.1} parent=11 // pred_check_branch
          %208 = sbr.rel (%p206) target = $region16
        $region15: #{actor_forward.1} parent=11 // pred_region
          _
        $region16: #{actor_forward.1} parent=11 // pred_fallthru
          _
        // Predicated region
        $region17: #{actor_forward.1} parent=11 // pred_check
          %p209 = pneg %p81
        $region18: #{actor_forward.1} parent=11 // pred_check_branch
          %211 = sbr.rel (%p209) target = $region20
        $region19: #{actor_forward.1} parent=11 // pred_region
          _
        $region20: #{actor_forward.1} parent=11 // pred_fallthru
          _
        // Predicated region
        $region21: #{actor_forward.1} parent=11 // pred_check
          %p212 = pneg %p102
        $region22: #{actor_forward.1} parent=11 // pred_check_branch
          %214 = sbr.rel (%p212) target = $region24
        $region23: #{actor_forward.1} parent=11 // pred_region
          _
        $region24: #{actor_forward.1} parent=11 // pred_fallthru
          _
        // Predicated region
        $region25: #{actor_forward.1} parent=11 // pred_check
          %p215 = pneg %p123
        $region26: #{actor_forward.1} parent=11 // pred_check_branch
          %217 = sbr.rel (%p215) target = $region28
        $region27: #{actor_forward.1} parent=11 // pred_region
          _
        $region28: #{actor_forward.1} parent=11 // pred_fallthru
          _
        // Predicated region
        $region29: #{actor_forward.1} parent=11 // pred_check
          %p218 = pneg %p144
        $region30: #{actor_forward.1} parent=11 // pred_check_branch
          %220 = sbr.rel (%p218) target = $region32
        $region31: #{actor_forward.1} parent=11 // pred_region
          _
        $region32: #{actor_forward.1} parent=11 // pred_fallthru
          _
        // Predicated region
        $region33: #{actor_forward.1} parent=11 // pred_check
          %p221 = pneg %p165
        $region34: #{actor_forward.1} parent=11 // pred_check_branch
          %223 = sbr.rel (%p221) target = $region36
        $region35: #{actor_forward.1} parent=11 // pred_region
          _
        $region36: #{actor_forward.1} parent=11 // pred_fallthru
          _
      $region12: #{actor_forward.1} parent=5 // pred_fallthru
        _
      %p224 = scmp.lt.s32.totalorder %s13, 2
      // Predicated region
      $region37: #{actor_forward.1} parent=5 // pred_check
        %p225 = pneg %p224
      $region38: #{actor_forward.1} parent=5 // pred_check_branch
        %227 = sbr.rel (%p225) target = $region40
      $region39: #{actor_forward.1} parent=5 // pred_region
        // Predicated region
        $region41: #{actor_forward.1} parent=39 // pred_check
          %p228 = pneg %p33
        $region42: #{actor_forward.1} parent=39 // pred_check_branch
          %230 = sbr.rel (%p228) target = $region44
        $region43: #{actor_forward.1} parent=39 // pred_region
          %s231 = smul.u32 64, %s13
          %s232 = ssub.s32 65, %s231
          %p233 = scmp.lt.s32.totalorder %s232, 64
          %s234 = scalar_select %p233, %s232, 64
          %s235 = smul.u32 128, %s234
          %p236 = scmp.lt.s32.totalorder %s231, 64
          %s237 = scalar_select %p236, %s231, 64
          %s238 = smul.addr %s237, 8
          %s239 = scalar_lea.vmem %s0, %s238
          %s240 = smul.u32 64, %s13
          %s241 = ssub.s32 65, %s240
          %p242 = scmp.lt.s32.totalorder %s241, 64
          %s243 = scalar_select %p242, %s241, 64
          %s244 = smul.u32 128, %s243
        $region44: #{actor_forward.1} parent=39 // pred_fallthru
          _
      $region40: #{actor_forward.1} parent=5 // pred_fallthru
        _
      %p245 = scmp.le.s32.totalorder 1, %s13
      %p246 = scmp.lt.s32.totalorder %s13, 3
      %p247 = pnand %p245, %p246
      %p248 = pneg %p247
      // Predicated region
      $region45: #{actor_forward.1} parent=5 // pred_check
        _
      $region46: #{actor_forward.1} parent=5 // pred_check_branch
        %250 = sbr.rel (%p247) target = $region48
      $region47: #{actor_forward.1} parent=5 // pred_region
        %s251 = ssub.s32 %s13, 1
        %s252 = smul.u32 64, %s18
        %s253 = ssub.s32 65, %s252
        %p254 = scmp.lt.s32.totalorder %s253, 64
        %s255 = scalar_select %p254, %s253, 64
        %s256 = smul.u32 128, %s255
        %p257 = scmp.lt.s32.totalorder %s252, 64
        %s258 = scalar_select %p257, %s252, 64
        %s259 = smul.addr %s258, 8
        %s260 = scalar_lea.vmem %s0, %s259
        %p261 = pneg %p39
        %p262 = pneg %p36
        %p263 = pneg %p60
        %p264 = pneg %p57
        %p265 = pneg %p81
        %p266 = pneg %p78
        %p267 = pneg %p102
        %p268 = pneg %p99
        %p269 = pneg %p123
        %p270 = pneg %p120
        %p271 = pneg %p144
        %p272 = pneg %p141
        %p273 = pneg %p165
        %p274 = pneg %p162
        %p275 = pneg %p191
        %p276 = pneg %p188
        %s277 = sand.u32 %s178, 1
        %s278 = sand.u32 %s178, 1
        %s279 = smul.addr %s278, 512
        %s280 = scalar_lea.vmem [#allocation2], %s279
        %s281 = smul.u32 64, %s18
        %s282 = ssub.s32 65, %s281
        %p283 = scmp.lt.s32.totalorder %s282, 64
        %s284 = scalar_select %p283, %s282, 64
        %s285 = smul.u32 128, %s284
        %p286 = scmp.lt.s32.totalorder %s281, 64
        %s287 = scalar_select %p286, %s281, 64
        %s288 = smul.addr %s287, 8
        %s289 = scalar_lea.vmem %s0, %s288
        %s290 = smul.u32 64, %s18
        %s291 = ssub.s32 65, %s290
        %p292 = scmp.lt.s32.totalorder %s291, 64
        %s293 = scalar_select %p292, %s291, 64
        %s294 = smul.u32 128, %s293
        %s295 = smul.u32 64, %s18
        %s296 = ssub.s32 65, %s295
        %p297 = scmp.lt.s32.totalorder %s296, 64
        %s298 = scalar_select %p297, %s296, 64
        %s299 = smul.u32 128, %s298
        %v301 = vld [vmem:[%s289] sm:$0xff]
        %v302 = vld [vmem:[%s289 + $0x8] sm:$0xff]
        %v303 = vld [vmem:[%s289 + $0x10] sm:$0xff]
        %v304 = vld [vmem:[%s289 + $0x18] sm:$0xff]
        %v305 = vld [vmem:[%s289 + $0x20] sm:$0xff]
        %v306 = vld [vmem:[%s289 + $0x28] sm:$0xff]
        %v307 = vld [vmem:[%s289 + $0x30] sm:$0xff]
        %v308 = vld [vmem:[%s289 + $0x38] sm:$0xff]
        %v309 = vld [vmem:[%s289 + $0x40] sm:$0xff]
        %v310 = vld [vmem:[%s289 + $0x48] sm:$0xff]
        %v311 = vld [vmem:[%s289 + $0x50] sm:$0xff]
        %v312 = vld [vmem:[%s289 + $0x58] sm:$0xff]
        %v313 = vld [vmem:[%s289 + $0x60] sm:$0xff]
        %v314 = vld [vmem:[%s289 + $0x68] sm:$0xff]
        %v315 = vld [vmem:[%s289 + $0x70] sm:$0xff]
        %v316 = vld [vmem:[%s289 + $0x78] sm:$0xff]
        %v317 = vld [vmem:[%s289 + $0x80] sm:$0xff]
        %v318 = vld [vmem:[%s289 + $0x88] sm:$0xff]
        %v319 = vld [vmem:[%s289 + $0x90] sm:$0xff]
        %v320 = vld [vmem:[%s289 + $0x98] sm:$0xff]
        %v321 = vld [vmem:[%s289 + $0xa0] sm:$0xff]
        %v322 = vld [vmem:[%s289 + $0xa8] sm:$0xff]
        %v323 = vld [vmem:[%s289 + $0xb0] sm:$0xff]
        %v324 = vld [vmem:[%s289 + $0xb8] sm:$0xff]
        %v325 = vld [vmem:[%s289 + $0xc0] sm:$0xff]
        %v326 = vld [vmem:[%s289 + $0xc8] sm:$0xff]
        %v327 = vld [vmem:[%s289 + $0xd0] sm:$0xff]
        %v328 = vld [vmem:[%s289 + $0xd8] sm:$0xff]
        %v329 = vld [vmem:[%s289 + $0xe0] sm:$0xff]
        %v330 = vld [vmem:[%s289 + $0xe8] sm:$0xff]
        %v331 = vld [vmem:[%s289 + $0xf0] sm:$0xff]
        %v332 = vld [vmem:[%s289 + $0xf8] sm:$0xff]
        %v333 = vld [vmem:[%s289 + $0x100] sm:$0xff]
        %v334 = vld [vmem:[%s289 + $0x108] sm:$0xff]
        %v335 = vld [vmem:[%s289 + $0x110] sm:$0xff]
        %v336 = vld [vmem:[%s289 + $0x118] sm:$0xff]
        %v337 = vld [vmem:[%s289 + $0x120] sm:$0xff]
        %v338 = vld [vmem:[%s289 + $0x128] sm:$0xff]
        %v339 = vld [vmem:[%s289 + $0x130] sm:$0xff]
        %v340 = vld [vmem:[%s289 + $0x138] sm:$0xff]
        %v341 = vld [vmem:[%s289 + $0x140] sm:$0xff]
        %v342 = vld [vmem:[%s289 + $0x148] sm:$0xff]
        %v343 = vld [vmem:[%s289 + $0x150] sm:$0xff]
        %v344 = vld [vmem:[%s289 + $0x158] sm:$0xff]
        %v345 = vld [vmem:[%s289 + $0x160] sm:$0xff]
        %v346 = vld [vmem:[%s289 + $0x168] sm:$0xff]
        %v347 = vld [vmem:[%s289 + $0x170] sm:$0xff]
        %v348 = vld [vmem:[%s289 + $0x178] sm:$0xff]
        %v349 = vld [vmem:[%s289 + $0x180] sm:$0xff]
        %v350 = vld [vmem:[%s289 + $0x188] sm:$0xff]
        %v351 = vld [vmem:[%s289 + $0x190] sm:$0xff]
        %v352 = vld [vmem:[%s289 + $0x198] sm:$0xff]
        %v353 = vld [vmem:[%s289 + $0x1a0] sm:$0xff]
        %v354 = vld [vmem:[%s289 + $0x1a8] sm:$0xff]
        %v355 = vld [vmem:[%s289 + $0x1b0] sm:$0xff]
        %v356 = vld [vmem:[%s289 + $0x1b8] sm:$0xff]
        %v357 = vld [vmem:[%s289 + $0x1c0] sm:$0xff]
        %v358 = vld [vmem:[%s289 + $0x1c8] sm:$0xff]
        %v359 = vld [vmem:[%s289 + $0x1d0] sm:$0xff]
        %v360 = vld [vmem:[%s289 + $0x1d8] sm:$0xff]
        %v361 = vld [vmem:[%s289 + $0x1e0] sm:$0xff]
        %v362 = vld [vmem:[%s289 + $0x1e8] sm:$0xff]
        %v363 = vld [vmem:[%s289 + $0x1f0] sm:$0xff]
        %v364 = vld [vmem:[%s289 + $0x1f8] sm:$0xff]
        %v365 = vpack.c.bf16 %v302, %v301
        %v366 = vpack.c.bf16 %v304, %v303
        %v367 = vpack.c.bf16 %v306, %v305
        %v368 = vpack.c.bf16 %v308, %v307
        %v369 = vpack.c.bf16 %v310, %v309
        %v370 = vpack.c.bf16 %v312, %v311
        %v371 = vpack.c.bf16 %v314, %v313
        %v372 = vpack.c.bf16 %v316, %v315
        %v373 = vpack.c.bf16 %v318, %v317
        %v374 = vpack.c.bf16 %v320, %v319
        %v375 = vpack.c.bf16 %v322, %v321
        %v376 = vpack.c.bf16 %v324, %v323
        %v377 = vpack.c.bf16 %v326, %v325
        %v378 = vpack.c.bf16 %v328, %v327
        %v379 = vpack.c.bf16 %v330, %v329
        %v380 = vpack.c.bf16 %v332, %v331
        %v381 = vpack.c.bf16 %v334, %v333
        %v382 = vpack.c.bf16 %v336, %v335
        %v383 = vpack.c.bf16 %v338, %v337
        %v384 = vpack.c.bf16 %v340, %v339
        %v385 = vpack.c.bf16 %v342, %v341
        %v386 = vpack.c.bf16 %v344, %v343
        %v387 = vpack.c.bf16 %v346, %v345
        %v388 = vpack.c.bf16 %v348, %v347
        %v389 = vpack.c.bf16 %v350, %v349
        %v390 = vpack.c.bf16 %v352, %v351
        %v391 = vpack.c.bf16 %v354, %v353
        %v392 = vpack.c.bf16 %v356, %v355
        %v393 = vpack.c.bf16 %v358, %v357
        %v394 = vpack.c.bf16 %v360, %v359
        %v395 = vpack.c.bf16 %v362, %v361
        %v396 = vpack.c.bf16 %v364, %v363
        %v397 = vld [vmem:[%s1] sm:$0xf]
        %v398 = vld [vmem:[%s1 + $0x4] sm:$0xf]
        %v399 = vld [vmem:[%s1 + $0x8] sm:$0xf]
        %v400 = vld [vmem:[%s2] sm:$0x1]
        %v402 = vlaneseq
        %v403 = vshrl.u32 %v402, 7
        %v404 = vsub.s32 0, %v403
        %v405 = vrot.slane %v400, %v404
        %v410 = vunpack.c.l.b16 %v397
        %v411 = vunpack.c.l.b16 %v398
        %v412 = vunpack.c.l.b16 %v399
        %v413 = vpack.c.b16 %v411, %v410
        %v414 = vpack.c.b16 %v412, %v412
        %vm416 = vcmask 195584
        %v418 = vsel %vm416, %v365, 0
        %v421 = vsel %vm416, %v366, 0
        %v424 = vsel %vm416, %v367, 0
        %v427 = vsel %vm416, %v368, 0
        %v430 = vsel %vm416, %v369, 0
        %v433 = vsel %vm416, %v370, 0
        %v436 = vsel %vm416, %v371, 0
        %v439 = vsel %vm416, %v372, 0
        %v442 = vsel %vm416, %v373, 0
        %v445 = vsel %vm416, %v374, 0
        %v448 = vsel %vm416, %v375, 0
        %v451 = vsel %vm416, %v376, 0
        %v454 = vsel %vm416, %v377, 0
        %v457 = vsel %vm416, %v378, 0
        %v460 = vsel %vm416, %v379, 0
        %v463 = vsel %vm416, %v380, 0
        %v466 = vsel %vm416, %v381, 0
        %v469 = vsel %vm416, %v382, 0
        %v472 = vsel %vm416, %v383, 0
        %v475 = vsel %vm416, %v384, 0
        %v478 = vsel %vm416, %v385, 0
        %v481 = vsel %vm416, %v386, 0
        %v484 = vsel %vm416, %v387, 0
        %v487 = vsel %vm416, %v388, 0
        %v490 = vsel %vm416, %v389, 0
        %v493 = vsel %vm416, %v390, 0
        %v496 = vsel %vm416, %v391, 0
        %v499 = vsel %vm416, %v392, 0
        %v502 = vsel %vm416, %v393, 0
        %v505 = vsel %vm416, %v394, 0
        %v508 = vsel %vm416, %v395, 0
        %v511 = vsel %vm416, %v396, 0
        %vm513 = vcmask 1043456
        %v515 = vsel %vm513, %v414, 0
        %517 = vmatprep.subr.bf16.mxu0 0
        %518 = vmatpush1.bf16.msra.mxu0 0
        %519 = vmatprep.subr.bf16.mxu0 0
        %520 = vmatpush1.bf16.msra.mxu0 0
        %521 = vmatprep.subr.bf16.mxu0 0
        %522 = vmatpush1.bf16.msra.mxu0 0
        %523 = vmatprep.subr.bf16.mxu0 0
        %524 = vmatpush1.bf16.msra.mxu0 0
        %525 = vmatprep.subr.bf16.mxu0 0
        %526 = vmatpush1.bf16.msra.mxu0 0
        %527 = vmatprep.subr.bf16.mxu0 0
        %528 = vmatpush1.bf16.msra.mxu0 0
        %529 = vmatprep.subr.bf16.mxu0 0
        %530 = vmatpush1.bf16.msra.mxu0 %v515
        %531 = vmatprep.subr.bf16.mxu0 0
        %532 = vmatpush1.bf16.msra.mxu0 %v413
        %533 = vmatprep.subr.bf16.mxu0 0
        %534 = vmatpush2.bf16.msra.mxu0 0
        %535 = vmatprep.subr.bf16.mxu0 0
        %536 = vmatpush2.bf16.msra.mxu0 0
        %537 = vmatprep.subr.bf16.mxu0 0
        %538 = vmatpush2.bf16.msra.mxu0 0
        %539 = vmatprep.subr.bf16.mxu0 0
        %540 = vmatpush2.bf16.msra.mxu0 0
        %541 = vmatprep.subr.bf16.mxu0 0
        %542 = vmatpush2.bf16.msra.mxu0 0
        %543 = vmatprep.subr.bf16.mxu0 0
        %544 = vmatpush2.bf16.msra.mxu0 0
        %545 = vmatprep.subr.bf16.mxu0 0
        %546 = vmatpush2.bf16.msra.mxu0 0
        %547 = vmatprep.subr.bf16.mxu0 0
        %548 = vmatpush2.bf16.msra.mxu0 0
        %549 = vmatprep.mubr.bf16.mxu0 0
        %550 = vmatmul.mubr.bf16.gmra.mxu0 %v418
        %v551 = vpop.f32.mrf.mxu0
        %v552 = vadd.f32 %v405, %v551
        %v553 = vpop.f32.mrf.mxu0
        %v554 = vpop.f32.mrf.mxu0
        %v555 = vadd.f32 %v405, %v554
        %v556 = vpop.f32.mrf.mxu0
        %557 = vmatprep.mubr.bf16.mxu0 0
        %558 = vmatmul.mubr.bf16.gmra.mxu0 %v421
        %v559 = vpop.f32.mrf.mxu0
        %v560 = vadd.f32 %v405, %v559
        %v561 = vpop.f32.mrf.mxu0
        %v562 = vpop.f32.mrf.mxu0
        %v563 = vadd.f32 %v405, %v562
        %v564 = vpop.f32.mrf.mxu0
        %565 = vmatprep.mubr.bf16.mxu0 0
        %566 = vmatmul.mubr.bf16.gmra.mxu0 %v424
        %v567 = vpop.f32.mrf.mxu0
        %v568 = vadd.f32 %v405, %v567
        %v569 = vpop.f32.mrf.mxu0
        %v570 = vpop.f32.mrf.mxu0
        %v571 = vadd.f32 %v405, %v570
        %v572 = vpop.f32.mrf.mxu0
        %573 = vmatprep.mubr.bf16.mxu0 0
        %574 = vmatmul.mubr.bf16.gmra.mxu0 %v427
        %v575 = vpop.f32.mrf.mxu0
        %v576 = vadd.f32 %v405, %v575
        %v577 = vpop.f32.mrf.mxu0
        %v578 = vpop.f32.mrf.mxu0
        %v579 = vadd.f32 %v405, %v578
        %v580 = vpop.f32.mrf.mxu0
        %581 = vmatprep.mubr.bf16.mxu0 0
        %582 = vmatmul.mubr.bf16.gmra.mxu0 %v430
        %v583 = vpop.f32.mrf.mxu0
        %v584 = vadd.f32 %v405, %v583
        %v585 = vpop.f32.mrf.mxu0
        %v586 = vpop.f32.mrf.mxu0
        %v587 = vadd.f32 %v405, %v586
        %v588 = vpop.f32.mrf.mxu0
        %589 = vmatprep.mubr.bf16.mxu0 0
        %590 = vmatmul.mubr.bf16.gmra.mxu0 %v433
        %v591 = vpop.f32.mrf.mxu0
        %v592 = vadd.f32 %v405, %v591
        %v593 = vpop.f32.mrf.mxu0
        %v594 = vpop.f32.mrf.mxu0
        %v595 = vadd.f32 %v405, %v594
        %v596 = vpop.f32.mrf.mxu0
        %597 = vmatprep.mubr.bf16.mxu0 0
        %598 = vmatmul.mubr.bf16.gmra.mxu0 %v436
        %v599 = vpop.f32.mrf.mxu0
        %v600 = vadd.f32 %v405, %v599
        %v601 = vpop.f32.mrf.mxu0
        %v602 = vpop.f32.mrf.mxu0
        %v603 = vadd.f32 %v405, %v602
        %v604 = vpop.f32.mrf.mxu0
        %605 = vmatprep.mubr.bf16.mxu0 0
        %606 = vmatmul.mubr.bf16.gmra.mxu0 %v439
        %v607 = vpop.f32.mrf.mxu0
        %v608 = vadd.f32 %v405, %v607
        %v609 = vpop.f32.mrf.mxu0
        %v610 = vpop.f32.mrf.mxu0
        %v611 = vadd.f32 %v405, %v610
        %v612 = vpop.f32.mrf.mxu0
        %613 = vmatprep.mubr.bf16.mxu0 0
        %614 = vmatmul.mubr.bf16.gmra.mxu0 %v442
        %v615 = vpop.f32.mrf.mxu0
        %v616 = vadd.f32 %v405, %v615
        %v617 = vpop.f32.mrf.mxu0
        %v618 = vpop.f32.mrf.mxu0
        %v619 = vadd.f32 %v405, %v618
        %v620 = vpop.f32.mrf.mxu0
        %621 = vmatprep.mubr.bf16.mxu0 0
        %622 = vmatmul.mubr.bf16.gmra.mxu0 %v445
        %v623 = vpop.f32.mrf.mxu0
        %v624 = vadd.f32 %v405, %v623
        %v625 = vpop.f32.mrf.mxu0
        %v626 = vpop.f32.mrf.mxu0
        %v627 = vadd.f32 %v405, %v626
        %v628 = vpop.f32.mrf.mxu0
        %629 = vmatprep.mubr.bf16.mxu0 0
        %630 = vmatmul.mubr.bf16.gmra.mxu0 %v448
        %v631 = vpop.f32.mrf.mxu0
        %v632 = vadd.f32 %v405, %v631
        %v633 = vpop.f32.mrf.mxu0
        %v634 = vpop.f32.mrf.mxu0
        %v635 = vadd.f32 %v405, %v634
        %v636 = vpop.f32.mrf.mxu0
        %637 = vmatprep.mubr.bf16.mxu0 0
        %638 = vmatmul.mubr.bf16.gmra.mxu0 %v451
        %v639 = vpop.f32.mrf.mxu0
        %v640 = vadd.f32 %v405, %v639
        %v641 = vpop.f32.mrf.mxu0
        %v642 = vpop.f32.mrf.mxu0
        %v643 = vadd.f32 %v405, %v642
        %v644 = vpop.f32.mrf.mxu0
        %645 = vmatprep.mubr.bf16.mxu0 0
        %646 = vmatmul.mubr.bf16.gmra.mxu0 %v454
        %v647 = vpop.f32.mrf.mxu0
        %v648 = vadd.f32 %v405, %v647
        %v649 = vpop.f32.mrf.mxu0
        %v650 = vpop.f32.mrf.mxu0
        %v651 = vadd.f32 %v405, %v650
        %v652 = vpop.f32.mrf.mxu0
        %653 = vmatprep.mubr.bf16.mxu0 0
        %654 = vmatmul.mubr.bf16.gmra.mxu0 %v457
        %v655 = vpop.f32.mrf.mxu0
        %v656 = vadd.f32 %v405, %v655
        %v657 = vpop.f32.mrf.mxu0
        %v658 = vpop.f32.mrf.mxu0
        %v659 = vadd.f32 %v405, %v658
        %v660 = vpop.f32.mrf.mxu0
        %661 = vmatprep.mubr.bf16.mxu0 0
        %662 = vmatmul.mubr.bf16.gmra.mxu0 %v460
        %v663 = vpop.f32.mrf.mxu0
        %v664 = vadd.f32 %v405, %v663
        %v665 = vpop.f32.mrf.mxu0
        %v666 = vpop.f32.mrf.mxu0
        %v667 = vadd.f32 %v405, %v666
        %v668 = vpop.f32.mrf.mxu0
        %669 = vmatprep.mubr.bf16.mxu0 0
        %670 = vmatmul.mubr.bf16.gmra.mxu0 %v463
        %v671 = vpop.f32.mrf.mxu0
        %v672 = vadd.f32 %v405, %v671
        %v673 = vpop.f32.mrf.mxu0
        %v674 = vpop.f32.mrf.mxu0
        %v675 = vadd.f32 %v405, %v674
        %v676 = vpop.f32.mrf.mxu0
        %677 = vmatprep.mubr.bf16.mxu0 0
        %678 = vmatmul.mubr.bf16.gmra.mxu0 %v466
        %v679 = vpop.f32.mrf.mxu0
        %v680 = vadd.f32 %v405, %v679
        %v681 = vpop.f32.mrf.mxu0
        %v682 = vpop.f32.mrf.mxu0
        %v683 = vadd.f32 %v405, %v682
        %v684 = vpop.f32.mrf.mxu0
        %685 = vmatprep.mubr.bf16.mxu0 0
        %686 = vmatmul.mubr.bf16.gmra.mxu0 %v469
        %v687 = vpop.f32.mrf.mxu0
        %v688 = vadd.f32 %v405, %v687
        %v689 = vpop.f32.mrf.mxu0
        %v690 = vpop.f32.mrf.mxu0
        %v691 = vadd.f32 %v405, %v690
        %v692 = vpop.f32.mrf.mxu0
        %693 = vmatprep.mubr.bf16.mxu0 0
        %694 = vmatmul.mubr.bf16.gmra.mxu0 %v472
        %v695 = vpop.f32.mrf.mxu0
        %v696 = vadd.f32 %v405, %v695
        %v697 = vpop.f32.mrf.mxu0
        %v698 = vpop.f32.mrf.mxu0
        %v699 = vadd.f32 %v405, %v698
        %v700 = vpop.f32.mrf.mxu0
        %701 = vmatprep.mubr.bf16.mxu0 0
        %702 = vmatmul.mubr.bf16.gmra.mxu0 %v475
        %v703 = vpop.f32.mrf.mxu0
        %v704 = vadd.f32 %v405, %v703
        %v705 = vpop.f32.mrf.mxu0
        %v706 = vpop.f32.mrf.mxu0
        %v707 = vadd.f32 %v405, %v706
        %v708 = vpop.f32.mrf.mxu0
        %709 = vmatprep.mubr.bf16.mxu0 0
        %710 = vmatmul.mubr.bf16.gmra.mxu0 %v478
        %v711 = vpop.f32.mrf.mxu0
        %v712 = vadd.f32 %v405, %v711
        %v713 = vpop.f32.mrf.mxu0
        %v714 = vpop.f32.mrf.mxu0
        %v715 = vadd.f32 %v405, %v714
        %v716 = vpop.f32.mrf.mxu0
        %717 = vmatprep.mubr.bf16.mxu0 0
        %718 = vmatmul.mubr.bf16.gmra.mxu0 %v481
        %v719 = vpop.f32.mrf.mxu0
        %v720 = vadd.f32 %v405, %v719
        %v721 = vpop.f32.mrf.mxu0
        %v722 = vpop.f32.mrf.mxu0
        %v723 = vadd.f32 %v405, %v722
        %v724 = vpop.f32.mrf.mxu0
        %725 = vmatprep.mubr.bf16.mxu0 0
        %726 = vmatmul.mubr.bf16.gmra.mxu0 %v484
        %v727 = vpop.f32.mrf.mxu0
        %v728 = vadd.f32 %v405, %v727
        %v729 = vpop.f32.mrf.mxu0
        %v730 = vpop.f32.mrf.mxu0
        %v731 = vadd.f32 %v405, %v730
        %v732 = vpop.f32.mrf.mxu0
        %733 = vmatprep.mubr.bf16.mxu0 0
        %734 = vmatmul.mubr.bf16.gmra.mxu0 %v487
        %v735 = vpop.f32.mrf.mxu0
        %v736 = vadd.f32 %v405, %v735
        %v737 = vpop.f32.mrf.mxu0
        %v738 = vpop.f32.mrf.mxu0
        %v739 = vadd.f32 %v405, %v738
        %v740 = vpop.f32.mrf.mxu0
        %741 = vmatprep.mubr.bf16.mxu0 0
        %742 = vmatmul.mubr.bf16.gmra.mxu0 %v490
        %v743 = vpop.f32.mrf.mxu0
        %v744 = vadd.f32 %v405, %v743
        %v745 = vpop.f32.mrf.mxu0
        %v746 = vpop.f32.mrf.mxu0
        %v747 = vadd.f32 %v405, %v746
        %v748 = vpop.f32.mrf.mxu0
        %749 = vmatprep.mubr.bf16.mxu0 0
        %750 = vmatmul.mubr.bf16.gmra.mxu0 %v493
        %v751 = vpop.f32.mrf.mxu0
        %v752 = vadd.f32 %v405, %v751
        %v753 = vpop.f32.mrf.mxu0
        %v754 = vpop.f32.mrf.mxu0
        %v755 = vadd.f32 %v405, %v754
        %v756 = vpop.f32.mrf.mxu0
        %757 = vmatprep.mubr.bf16.mxu0 0
        %758 = vmatmul.mubr.bf16.gmra.mxu0 %v496
        %v759 = vpop.f32.mrf.mxu0
        %v760 = vadd.f32 %v405, %v759
        %v761 = vpop.f32.mrf.mxu0
        %v762 = vpop.f32.mrf.mxu0
        %v763 = vadd.f32 %v405, %v762
        %v764 = vpop.f32.mrf.mxu0
        %765 = vmatprep.mubr.bf16.mxu0 0
        %766 = vmatmul.mubr.bf16.gmra.mxu0 %v499
        %v767 = vpop.f32.mrf.mxu0
        %v768 = vadd.f32 %v405, %v767
        %v769 = vpop.f32.mrf.mxu0
        %v770 = vpop.f32.mrf.mxu0
        %v771 = vadd.f32 %v405, %v770
        %v772 = vpop.f32.mrf.mxu0
        %773 = vmatprep.mubr.bf16.mxu0 0
        %774 = vmatmul.mubr.bf16.gmra.mxu0 %v502
        %v775 = vpop.f32.mrf.mxu0
        %v776 = vadd.f32 %v405, %v775
        %v777 = vpop.f32.mrf.mxu0
        %v778 = vpop.f32.mrf.mxu0
        %v779 = vadd.f32 %v405, %v778
        %v780 = vpop.f32.mrf.mxu0
        %781 = vmatprep.mubr.bf16.mxu0 0
        %782 = vmatmul.mubr.bf16.gmra.mxu0 %v505
        %v783 = vpop.f32.mrf.mxu0
        %v784 = vadd.f32 %v405, %v783
        %v785 = vpop.f32.mrf.mxu0
        %v786 = vpop.f32.mrf.mxu0
        %v787 = vadd.f32 %v405, %v786
        %v788 = vpop.f32.mrf.mxu0
        %789 = vmatprep.mubr.bf16.mxu0 0
        %790 = vmatmul.mubr.bf16.gmra.mxu0 %v508
        %v791 = vpop.f32.mrf.mxu0
        %v792 = vadd.f32 %v405, %v791
        %v793 = vpop.f32.mrf.mxu0
        %v794 = vpop.f32.mrf.mxu0
        %v795 = vadd.f32 %v405, %v794
        %v796 = vpop.f32.mrf.mxu0
        %797 = vmatprep.mubr.bf16.mxu0 0
        %798 = vmatmul.mubr.bf16.gmra.mxu0 %v511
        %v799 = vpop.f32.mrf.mxu0
        %v800 = vadd.f32 %v405, %v799
        %v801 = vpop.f32.mrf.mxu0
        %v802 = vpop.f32.mrf.mxu0
        %v803 = vadd.f32 %v405, %v802
        %v804 = vpop.f32.mrf.mxu0
        %805 = vdwg.mxu0
        %v806 = vmax.f32 %v552, 0.0
        %v807 = vmax.f32 %v555, 0.0
        %v808 = vmax.f32 %v560, 0.0
        %v809 = vmax.f32 %v563, 0.0
        %v810 = vmax.f32 %v568, 0.0
        %v811 = vmax.f32 %v571, 0.0
        %v812 = vmax.f32 %v576, 0.0
        %v813 = vmax.f32 %v579, 0.0
        %v814 = vmax.f32 %v584, 0.0
        %v815 = vmax.f32 %v587, 0.0
        %v816 = vmax.f32 %v592, 0.0
        %v817 = vmax.f32 %v595, 0.0
        %v818 = vmax.f32 %v600, 0.0
        %v819 = vmax.f32 %v603, 0.0
        %v820 = vmax.f32 %v608, 0.0
        %v821 = vmax.f32 %v611, 0.0
        %v822 = vmax.f32 %v616, 0.0
        %v823 = vmax.f32 %v619, 0.0
        %v824 = vmax.f32 %v624, 0.0
        %v825 = vmax.f32 %v627, 0.0
        %v826 = vmax.f32 %v632, 0.0
        %v827 = vmax.f32 %v635, 0.0
        %v828 = vmax.f32 %v640, 0.0
        %v829 = vmax.f32 %v643, 0.0
        %v830 = vmax.f32 %v648, 0.0
        %v831 = vmax.f32 %v651, 0.0
        %v832 = vmax.f32 %v656, 0.0
        %v833 = vmax.f32 %v659, 0.0
        %v834 = vmax.f32 %v664, 0.0
        %v835 = vmax.f32 %v667, 0.0
        %v836 = vmax.f32 %v672, 0.0
        %v837 = vmax.f32 %v675, 0.0
        %v838 = vmax.f32 %v680, 0.0
        %v839 = vmax.f32 %v683, 0.0
        %v840 = vmax.f32 %v688, 0.0
        %v841 = vmax.f32 %v691, 0.0
        %v842 = vmax.f32 %v696, 0.0
        %v843 = vmax.f32 %v699, 0.0
        %v844 = vmax.f32 %v704, 0.0
        %v845 = vmax.f32 %v707, 0.0
        %v846 = vmax.f32 %v712, 0.0
        %v847 = vmax.f32 %v715, 0.0
        %v848 = vmax.f32 %v720, 0.0
        %v849 = vmax.f32 %v723, 0.0
        %v850 = vmax.f32 %v728, 0.0
        %v851 = vmax.f32 %v731, 0.0
        %v852 = vmax.f32 %v736, 0.0
        %v853 = vmax.f32 %v739, 0.0
        %v854 = vmax.f32 %v744, 0.0
        %v855 = vmax.f32 %v747, 0.0
        %v856 = vmax.f32 %v752, 0.0
        %v857 = vmax.f32 %v755, 0.0
        %v858 = vmax.f32 %v760, 0.0
        %v859 = vmax.f32 %v763, 0.0
        %v860 = vmax.f32 %v768, 0.0
        %v861 = vmax.f32 %v771, 0.0
        %v862 = vmax.f32 %v776, 0.0
        %v863 = vmax.f32 %v779, 0.0
        %v864 = vmax.f32 %v784, 0.0
        %v865 = vmax.f32 %v787, 0.0
        %v866 = vmax.f32 %v792, 0.0
        %v867 = vmax.f32 %v795, 0.0
        %v868 = vmax.f32 %v800, 0.0
        %v869 = vmax.f32 %v803, 0.0
        %v870 = vpack.c.bf16 %v807, %v806
        %v871 = vpack.c.bf16 %v809, %v808
        %v872 = vpack.c.bf16 %v811, %v810
        %v873 = vpack.c.bf16 %v813, %v812
        %v874 = vpack.c.bf16 %v815, %v814
        %v875 = vpack.c.bf16 %v817, %v816
        %v876 = vpack.c.bf16 %v819, %v818
        %v877 = vpack.c.bf16 %v821, %v820
        %v878 = vpack.c.bf16 %v823, %v822
        %v879 = vpack.c.bf16 %v825, %v824
        %v880 = vpack.c.bf16 %v827, %v826
        %v881 = vpack.c.bf16 %v829, %v828
        %v882 = vpack.c.bf16 %v831, %v830
        %v883 = vpack.c.bf16 %v833, %v832
        %v884 = vpack.c.bf16 %v835, %v834
        %v885 = vpack.c.bf16 %v837, %v836
        %v886 = vpack.c.bf16 %v839, %v838
        %v887 = vpack.c.bf16 %v841, %v840
        %v888 = vpack.c.bf16 %v843, %v842
        %v889 = vpack.c.bf16 %v845, %v844
        %v890 = vpack.c.bf16 %v847, %v846
        %v891 = vpack.c.bf16 %v849, %v848
        %v892 = vpack.c.bf16 %v851, %v850
        %v893 = vpack.c.bf16 %v853, %v852
        %v894 = vpack.c.bf16 %v855, %v854
        %v895 = vpack.c.bf16 %v857, %v856
        %v896 = vpack.c.bf16 %v859, %v858
        %v897 = vpack.c.bf16 %v861, %v860
        %v898 = vpack.c.bf16 %v863, %v862
        %v899 = vpack.c.bf16 %v865, %v864
        %v900 = vpack.c.bf16 %v867, %v866
        %v901 = vpack.c.bf16 %v869, %v868
        %v902 = vld [vmem:[%s3] sm:$0xf]
        %v903 = vld [vmem:[%s3 + $0x4] sm:$0xf]
        %v904 = vld [vmem:[%s3 + $0x8] sm:$0xf]
        %v905 = vld [vmem:[%s3 + $0xc] sm:$0xf]
        %v906 = vld [vmem:[%s3 + $0x10] sm:$0xf]
        %v907 = vld [vmem:[%s3 + $0x14] sm:$0xf]
        %v908 = vld [vmem:[%s3 + $0x18] sm:$0xf]
        %v909 = vld [vmem:[%s3 + $0x1c] sm:$0xf]
        %v910 = vld [vmem:[%s4] sm:$0x1]
        %v912 = vlaneseq
        %v913 = vshrl.u32 %v912, 7
        %v914 = vsub.s32 0, %v913
        %v915 = vrot.slane %v910, %v914
        %v925 = vunpack.c.l.b16 %v902
        %v926 = vunpack.c.l.b16 %v903
        %v927 = vunpack.c.l.b16 %v904
        %v928 = vunpack.c.l.b16 %v905
        %v929 = vunpack.c.l.b16 %v906
        %v930 = vunpack.c.l.b16 %v907
        %v931 = vunpack.c.l.b16 %v908
        %v932 = vunpack.c.l.b16 %v909
        %v933 = vpack.c.b16 %v926, %v925
        %v934 = vpack.c.b16 %v928, %v927
        %v935 = vpack.c.b16 %v930, %v929
        %v936 = vpack.c.b16 %v932, %v931
        %vm941 = vcmask 523264
        %v943 = vsel %vm941, %v870, 0
        %v946 = vsel %vm941, %v871, 0
        %v949 = vsel %vm941, %v872, 0
        %v952 = vsel %vm941, %v873, 0
        %v955 = vsel %vm941, %v874, 0
        %v958 = vsel %vm941, %v875, 0
        %v961 = vsel %vm941, %v876, 0
        %v964 = vsel %vm941, %v877, 0
        %v967 = vsel %vm941, %v878, 0
        %v970 = vsel %vm941, %v879, 0
        %v973 = vsel %vm941, %v880, 0
        %v976 = vsel %vm941, %v881, 0
        %v979 = vsel %vm941, %v882, 0
        %v982 = vsel %vm941, %v883, 0
        %v985 = vsel %vm941, %v884, 0
        %v988 = vsel %vm941, %v885, 0
        %v991 = vsel %vm941, %v886, 0
        %v994 = vsel %vm941, %v887, 0
        %v997 = vsel %vm941, %v888, 0
        %v1000 = vsel %vm941, %v889, 0
        %v1003 = vsel %vm941, %v890, 0
        %v1006 = vsel %vm941, %v891, 0
        %v1009 = vsel %vm941, %v892, 0
        %v1012 = vsel %vm941, %v893, 0
        %v1015 = vsel %vm941, %v894, 0
        %v1018 = vsel %vm941, %v895, 0
        %v1021 = vsel %vm941, %v896, 0
        %v1024 = vsel %vm941, %v897, 0
        %v1027 = vsel %vm941, %v898, 0
        %v1030 = vsel %vm941, %v899, 0
        %v1033 = vsel %vm941, %v900, 0
        %v1036 = vsel %vm941, %v901, 0
        %1038 = vmatprep.subr.bf16.mxu0 0
        %1039 = vmatpush1.bf16.msra.mxu0 0
        %1040 = vmatprep.subr.bf16.mxu0 0
        %1041 = vmatpush1.bf16.msra.mxu0 0
        %1042 = vmatprep.subr.bf16.mxu0 0
        %1043 = vmatpush1.bf16.msra.mxu0 0
        %1044 = vmatprep.subr.bf16.mxu0 0
        %1045 = vmatpush1.bf16.msra.mxu0 0
        %1046 = vmatprep.subr.bf16.mxu0 0
        %1047 = vmatpush1.bf16.msra.mxu0 %v936
        %1048 = vmatprep.subr.bf16.mxu0 0
        %1049 = vmatpush1.bf16.msra.mxu0 %v935
        %1050 = vmatprep.subr.bf16.mxu0 0
        %1051 = vmatpush1.bf16.msra.mxu0 %v934
        %1052 = vmatprep.subr.bf16.mxu0 0
        %1053 = vmatpush1.bf16.msra.mxu0 %v933
        %1054 = vmatprep.subr.bf16.mxu0 0
        %1055 = vmatpush2.bf16.msra.mxu0 0
        %1056 = vmatprep.subr.bf16.mxu0 0
        %1057 = vmatpush2.bf16.msra.mxu0 0
        %1058 = vmatprep.subr.bf16.mxu0 0
        %1059 = vmatpush2.bf16.msra.mxu0 0
        %1060 = vmatprep.subr.bf16.mxu0 0
        %1061 = vmatpush2.bf16.msra.mxu0 0
        %1062 = vmatprep.subr.bf16.mxu0 0
        %1063 = vmatpush2.bf16.msra.mxu0 0
        %1064 = vmatprep.subr.bf16.mxu0 0
        %1065 = vmatpush2.bf16.msra.mxu0 0
        %1066 = vmatprep.subr.bf16.mxu0 0
        %1067 = vmatpush2.bf16.msra.mxu0 0
        %1068 = vmatprep.subr.bf16.mxu0 0
        %1069 = vmatpush2.bf16.msra.mxu0 0
        %1070 = vmatprep.mubr.bf16.mxu0 0
        %1071 = vmatmul.mubr.bf16.gmra.mxu0 %v943
        %v1072 = vpop.f32.mrf.mxu0
        %v1073 = vadd.f32 %v915, %v1072
        %v1074 = vpop.f32.mrf.mxu0
        %v1075 = vpop.f32.mrf.mxu0
        %v1076 = vadd.f32 %v915, %v1075
        %v1077 = vpop.f32.mrf.mxu0
        %1078 = vmatprep.mubr.bf16.mxu0 0
        %1079 = vmatmul.mubr.bf16.gmra.mxu0 %v946
        %v1080 = vpop.f32.mrf.mxu0
        %v1081 = vadd.f32 %v915, %v1080
        %v1082 = vpop.f32.mrf.mxu0
        %v1083 = vpop.f32.mrf.mxu0
        %v1084 = vadd.f32 %v915, %v1083
        %v1085 = vpop.f32.mrf.mxu0
        %1086 = vmatprep.mubr.bf16.mxu0 0
        %1087 = vmatmul.mubr.bf16.gmra.mxu0 %v949
        %v1088 = vpop.f32.mrf.mxu0
        %v1089 = vadd.f32 %v915, %v1088
        %v1090 = vpop.f32.mrf.mxu0
        %v1091 = vpop.f32.mrf.mxu0
        %v1092 = vadd.f32 %v915, %v1091
        %v1093 = vpop.f32.mrf.mxu0
        %1094 = vmatprep.mubr.bf16.mxu0 0
        %1095 = vmatmul.mubr.bf16.gmra.mxu0 %v952
        %v1096 = vpop.f32.mrf.mxu0
        %v1097 = vadd.f32 %v915, %v1096
        %v1098 = vpop.f32.mrf.mxu0
        %v1099 = vpop.f32.mrf.mxu0
        %v1100 = vadd.f32 %v915, %v1099
        %v1101 = vpop.f32.mrf.mxu0
        %1102 = vmatprep.mubr.bf16.mxu0 0
        %1103 = vmatmul.mubr.bf16.gmra.mxu0 %v955
        %v1104 = vpop.f32.mrf.mxu0
        %v1105 = vadd.f32 %v915, %v1104
        %v1106 = vpop.f32.mrf.mxu0
        %v1107 = vpop.f32.mrf.mxu0
        %v1108 = vadd.f32 %v915, %v1107
        %v1109 = vpop.f32.mrf.mxu0
        %1110 = vmatprep.mubr.bf16.mxu0 0
        %1111 = vmatmul.mubr.bf16.gmra.mxu0 %v958
        %v1112 = vpop.f32.mrf.mxu0
        %v1113 = vadd.f32 %v915, %v1112
        %v1114 = vpop.f32.mrf.mxu0
        %v1115 = vpop.f32.mrf.mxu0
        %v1116 = vadd.f32 %v915, %v1115
        %v1117 = vpop.f32.mrf.mxu0
        %1118 = vmatprep.mubr.bf16.mxu0 0
        %1119 = vmatmul.mubr.bf16.gmra.mxu0 %v961
        %v1120 = vpop.f32.mrf.mxu0
        %v1121 = vadd.f32 %v915, %v1120
        %v1122 = vpop.f32.mrf.mxu0
        %v1123 = vpop.f32.mrf.mxu0
        %v1124 = vadd.f32 %v915, %v1123
        %v1125 = vpop.f32.mrf.mxu0
        %1126 = vmatprep.mubr.bf16.mxu0 0
        %1127 = vmatmul.mubr.bf16.gmra.mxu0 %v964
        %v1128 = vpop.f32.mrf.mxu0
        %v1129 = vadd.f32 %v915, %v1128
        %v1130 = vpop.f32.mrf.mxu0
        %v1131 = vpop.f32.mrf.mxu0
        %v1132 = vadd.f32 %v915, %v1131
        %v1133 = vpop.f32.mrf.mxu0
        %1134 = vmatprep.mubr.bf16.mxu0 0
        %1135 = vmatmul.mubr.bf16.gmra.mxu0 %v967
        %v1136 = vpop.f32.mrf.mxu0
        %v1137 = vadd.f32 %v915, %v1136
        %v1138 = vpop.f32.mrf.mxu0
        %v1139 = vpop.f32.mrf.mxu0
        %v1140 = vadd.f32 %v915, %v1139
        %v1141 = vpop.f32.mrf.mxu0
        %1142 = vmatprep.mubr.bf16.mxu0 0
        %1143 = vmatmul.mubr.bf16.gmra.mxu0 %v970
        %v1144 = vpop.f32.mrf.mxu0
        %v1145 = vadd.f32 %v915, %v1144
        %v1146 = vpop.f32.mrf.mxu0
        %v1147 = vpop.f32.mrf.mxu0
        %v1148 = vadd.f32 %v915, %v1147
        %v1149 = vpop.f32.mrf.mxu0
        %1150 = vmatprep.mubr.bf16.mxu0 0
        %1151 = vmatmul.mubr.bf16.gmra.mxu0 %v973
        %v1152 = vpop.f32.mrf.mxu0
        %v1153 = vadd.f32 %v915, %v1152
        %v1154 = vpop.f32.mrf.mxu0
        %v1155 = vpop.f32.mrf.mxu0
        %v1156 = vadd.f32 %v915, %v1155
        %v1157 = vpop.f32.mrf.mxu0
        %1158 = vmatprep.mubr.bf16.mxu0 0
        %1159 = vmatmul.mubr.bf16.gmra.mxu0 %v976
        %v1160 = vpop.f32.mrf.mxu0
        %v1161 = vadd.f32 %v915, %v1160
        %v1162 = vpop.f32.mrf.mxu0
        %v1163 = vpop.f32.mrf.mxu0
        %v1164 = vadd.f32 %v915, %v1163
        %v1165 = vpop.f32.mrf.mxu0
        %1166 = vmatprep.mubr.bf16.mxu0 0
        %1167 = vmatmul.mubr.bf16.gmra.mxu0 %v979
        %v1168 = vpop.f32.mrf.mxu0
        %v1169 = vadd.f32 %v915, %v1168
        %v1170 = vpop.f32.mrf.mxu0
        %v1171 = vpop.f32.mrf.mxu0
        %v1172 = vadd.f32 %v915, %v1171
        %v1173 = vpop.f32.mrf.mxu0
        %1174 = vmatprep.mubr.bf16.mxu0 0
        %1175 = vmatmul.mubr.bf16.gmra.mxu0 %v982
        %v1176 = vpop.f32.mrf.mxu0
        %v1177 = vadd.f32 %v915, %v1176
        %v1178 = vpop.f32.mrf.mxu0
        %v1179 = vpop.f32.mrf.mxu0
        %v1180 = vadd.f32 %v915, %v1179
        %v1181 = vpop.f32.mrf.mxu0
        %1182 = vmatprep.mubr.bf16.mxu0 0
        %1183 = vmatmul.mubr.bf16.gmra.mxu0 %v985
        %v1184 = vpop.f32.mrf.mxu0
        %v1185 = vadd.f32 %v915, %v1184
        %v1186 = vpop.f32.mrf.mxu0
        %v1187 = vpop.f32.mrf.mxu0
        %v1188 = vadd.f32 %v915, %v1187
        %v1189 = vpop.f32.mrf.mxu0
        %1190 = vmatprep.mubr.bf16.mxu0 0
        %1191 = vmatmul.mubr.bf16.gmra.mxu0 %v988
        %v1192 = vpop.f32.mrf.mxu0
        %v1193 = vadd.f32 %v915, %v1192
        %v1194 = vpop.f32.mrf.mxu0
        %v1195 = vpop.f32.mrf.mxu0
        %v1196 = vadd.f32 %v915, %v1195
        %v1197 = vpop.f32.mrf.mxu0
        %1198 = vmatprep.mubr.bf16.mxu0 0
        %1199 = vmatmul.mubr.bf16.gmra.mxu0 %v991
        %v1200 = vpop.f32.mrf.mxu0
        %v1201 = vadd.f32 %v915, %v1200
        %v1202 = vpop.f32.mrf.mxu0
        %v1203 = vpop.f32.mrf.mxu0
        %v1204 = vadd.f32 %v915, %v1203
        %v1205 = vpop.f32.mrf.mxu0
        %1206 = vmatprep.mubr.bf16.mxu0 0
        %1207 = vmatmul.mubr.bf16.gmra.mxu0 %v994
        %v1208 = vpop.f32.mrf.mxu0
        %v1209 = vadd.f32 %v915, %v1208
        %v1210 = vpop.f32.mrf.mxu0
        %v1211 = vpop.f32.mrf.mxu0
        %v1212 = vadd.f32 %v915, %v1211
        %v1213 = vpop.f32.mrf.mxu0
        %1214 = vmatprep.mubr.bf16.mxu0 0
        %1215 = vmatmul.mubr.bf16.gmra.mxu0 %v997
        %v1216 = vpop.f32.mrf.mxu0
        %v1217 = vadd.f32 %v915, %v1216
        %v1218 = vpop.f32.mrf.mxu0
        %v1219 = vpop.f32.mrf.mxu0
        %v1220 = vadd.f32 %v915, %v1219
        %v1221 = vpop.f32.mrf.mxu0
        %1222 = vmatprep.mubr.bf16.mxu0 0
        %1223 = vmatmul.mubr.bf16.gmra.mxu0 %v1000
        %v1224 = vpop.f32.mrf.mxu0
        %v1225 = vadd.f32 %v915, %v1224
        %v1226 = vpop.f32.mrf.mxu0
        %v1227 = vpop.f32.mrf.mxu0
        %v1228 = vadd.f32 %v915, %v1227
        %v1229 = vpop.f32.mrf.mxu0
        %1230 = vmatprep.mubr.bf16.mxu0 0
        %1231 = vmatmul.mubr.bf16.gmra.mxu0 %v1003
        %v1232 = vpop.f32.mrf.mxu0
        %v1233 = vadd.f32 %v915, %v1232
        %v1234 = vpop.f32.mrf.mxu0
        %v1235 = vpop.f32.mrf.mxu0
        %v1236 = vadd.f32 %v915, %v1235
        %v1237 = vpop.f32.mrf.mxu0
        %1238 = vmatprep.mubr.bf16.mxu0 0
        %1239 = vmatmul.mubr.bf16.gmra.mxu0 %v1006
        %v1240 = vpop.f32.mrf.mxu0
        %v1241 = vadd.f32 %v915, %v1240
        %v1242 = vpop.f32.mrf.mxu0
        %v1243 = vpop.f32.mrf.mxu0
        %v1244 = vadd.f32 %v915, %v1243
        %v1245 = vpop.f32.mrf.mxu0
        %1246 = vmatprep.mubr.bf16.mxu0 0
        %1247 = vmatmul.mubr.bf16.gmra.mxu0 %v1009
        %v1248 = vpop.f32.mrf.mxu0
        %v1249 = vadd.f32 %v915, %v1248
        %v1250 = vpop.f32.mrf.mxu0
        %v1251 = vpop.f32.mrf.mxu0
        %v1252 = vadd.f32 %v915, %v1251
        %v1253 = vpop.f32.mrf.mxu0
        %1254 = vmatprep.mubr.bf16.mxu0 0
        %1255 = vmatmul.mubr.bf16.gmra.mxu0 %v1012
        %v1256 = vpop.f32.mrf.mxu0
        %v1257 = vadd.f32 %v915, %v1256
        %v1258 = vpop.f32.mrf.mxu0
        %v1259 = vpop.f32.mrf.mxu0
        %v1260 = vadd.f32 %v915, %v1259
        %v1261 = vpop.f32.mrf.mxu0
        %1262 = vmatprep.mubr.bf16.mxu0 0
        %1263 = vmatmul.mubr.bf16.gmra.mxu0 %v1015
        %v1264 = vpop.f32.mrf.mxu0
        %v1265 = vadd.f32 %v915, %v1264
        %v1266 = vpop.f32.mrf.mxu0
        %v1267 = vpop.f32.mrf.mxu0
        %v1268 = vadd.f32 %v915, %v1267
        %v1269 = vpop.f32.mrf.mxu0
        %1270 = vmatprep.mubr.bf16.mxu0 0
        %1271 = vmatmul.mubr.bf16.gmra.mxu0 %v1018
        %v1272 = vpop.f32.mrf.mxu0
        %v1273 = vadd.f32 %v915, %v1272
        %v1274 = vpop.f32.mrf.mxu0
        %v1275 = vpop.f32.mrf.mxu0
        %v1276 = vadd.f32 %v915, %v1275
        %v1277 = vpop.f32.mrf.mxu0
        %1278 = vmatprep.mubr.bf16.mxu0 0
        %1279 = vmatmul.mubr.bf16.gmra.mxu0 %v1021
        %v1280 = vpop.f32.mrf.mxu0
        %v1281 = vadd.f32 %v915, %v1280
        %v1282 = vpop.f32.mrf.mxu0
        %v1283 = vpop.f32.mrf.mxu0
        %v1284 = vadd.f32 %v915, %v1283
        %v1285 = vpop.f32.mrf.mxu0
        %1286 = vmatprep.mubr.bf16.mxu0 0
        %1287 = vmatmul.mubr.bf16.gmra.mxu0 %v1024
        %v1288 = vpop.f32.mrf.mxu0
        %v1289 = vadd.f32 %v915, %v1288
        %v1290 = vpop.f32.mrf.mxu0
        %v1291 = vpop.f32.mrf.mxu0
        %v1292 = vadd.f32 %v915, %v1291
        %v1293 = vpop.f32.mrf.mxu0
        %1294 = vmatprep.mubr.bf16.mxu0 0
        %1295 = vmatmul.mubr.bf16.gmra.mxu0 %v1027
        %v1296 = vpop.f32.mrf.mxu0
        %v1297 = vadd.f32 %v915, %v1296
        %v1298 = vpop.f32.mrf.mxu0
        %v1299 = vpop.f32.mrf.mxu0
        %v1300 = vadd.f32 %v915, %v1299
        %v1301 = vpop.f32.mrf.mxu0
        %1302 = vmatprep.mubr.bf16.mxu0 0
        %1303 = vmatmul.mubr.bf16.gmra.mxu0 %v1030
        %v1304 = vpop.f32.mrf.mxu0
        %v1305 = vadd.f32 %v915, %v1304
        %v1306 = vpop.f32.mrf.mxu0
        %v1307 = vpop.f32.mrf.mxu0
        %v1308 = vadd.f32 %v915, %v1307
        %v1309 = vpop.f32.mrf.mxu0
        %1310 = vmatprep.mubr.bf16.mxu0 0
        %1311 = vmatmul.mubr.bf16.gmra.mxu0 %v1033
        %v1312 = vpop.f32.mrf.mxu0
        %v1313 = vadd.f32 %v915, %v1312
        %v1314 = vpop.f32.mrf.mxu0
        %v1315 = vpop.f32.mrf.mxu0
        %v1316 = vadd.f32 %v915, %v1315
        %v1317 = vpop.f32.mrf.mxu0
        %1318 = vmatprep.mubr.bf16.mxu0 0
        %1319 = vmatmul.mubr.bf16.gmra.mxu0 %v1036
        %v1320 = vpop.f32.mrf.mxu0
        %v1321 = vadd.f32 %v915, %v1320
        %v1322 = vpop.f32.mrf.mxu0
        %v1323 = vpop.f32.mrf.mxu0
        %v1324 = vadd.f32 %v915, %v1323
        %v1325 = vpop.f32.mrf.mxu0
        %1326 = vdwg.mxu0
        %v1327 = vmax.f32 %v1073, 0.0
        %v1328 = vmax.f32 %v1076, 0.0
        %v1329 = vmax.f32 %v1081, 0.0
        %v1330 = vmax.f32 %v1084, 0.0
        %v1331 = vmax.f32 %v1089, 0.0
        %v1332 = vmax.f32 %v1092, 0.0
        %v1333 = vmax.f32 %v1097, 0.0
        %v1334 = vmax.f32 %v1100, 0.0
        %v1335 = vmax.f32 %v1105, 0.0
        %v1336 = vmax.f32 %v1108, 0.0
        %v1337 = vmax.f32 %v1113, 0.0
        %v1338 = vmax.f32 %v1116, 0.0
        %v1339 = vmax.f32 %v1121, 0.0
        %v1340 = vmax.f32 %v1124, 0.0
        %v1341 = vmax.f32 %v1129, 0.0
        %v1342 = vmax.f32 %v1132, 0.0
        %v1343 = vmax.f32 %v1137, 0.0
        %v1344 = vmax.f32 %v1140, 0.0
        %v1345 = vmax.f32 %v1145, 0.0
        %v1346 = vmax.f32 %v1148, 0.0
        %v1347 = vmax.f32 %v1153, 0.0
        %v1348 = vmax.f32 %v1156, 0.0
        %v1349 = vmax.f32 %v1161, 0.0
        %v1350 = vmax.f32 %v1164, 0.0
        %v1351 = vmax.f32 %v1169, 0.0
        %v1352 = vmax.f32 %v1172, 0.0
        %v1353 = vmax.f32 %v1177, 0.0
        %v1354 = vmax.f32 %v1180, 0.0
        %v1355 = vmax.f32 %v1185, 0.0
        %v1356 = vmax.f32 %v1188, 0.0
        %v1357 = vmax.f32 %v1193, 0.0
        %v1358 = vmax.f32 %v1196, 0.0
        %v1359 = vmax.f32 %v1201, 0.0
        %v1360 = vmax.f32 %v1204, 0.0
        %v1361 = vmax.f32 %v1209, 0.0
        %v1362 = vmax.f32 %v1212, 0.0
        %v1363 = vmax.f32 %v1217, 0.0
        %v1364 = vmax.f32 %v1220, 0.0
        %v1365 = vmax.f32 %v1225, 0.0
        %v1366 = vmax.f32 %v1228, 0.0
        %v1367 = vmax.f32 %v1233, 0.0
        %v1368 = vmax.f32 %v1236, 0.0
        %v1369 = vmax.f32 %v1241, 0.0
        %v1370 = vmax.f32 %v1244, 0.0
        %v1371 = vmax.f32 %v1249, 0.0
        %v1372 = vmax.f32 %v1252, 0.0
        %v1373 = vmax.f32 %v1257, 0.0
        %v1374 = vmax.f32 %v1260, 0.0
        %v1375 = vmax.f32 %v1265, 0.0
        %v1376 = vmax.f32 %v1268, 0.0
        %v1377 = vmax.f32 %v1273, 0.0
        %v1378 = vmax.f32 %v1276, 0.0
        %v1379 = vmax.f32 %v1281, 0.0
        %v1380 = vmax.f32 %v1284, 0.0
        %v1381 = vmax.f32 %v1289, 0.0
        %v1382 = vmax.f32 %v1292, 0.0
        %v1383 = vmax.f32 %v1297, 0.0
        %v1384 = vmax.f32 %v1300, 0.0
        %v1385 = vmax.f32 %v1305, 0.0
        %v1386 = vmax.f32 %v1308, 0.0
        %v1387 = vmax.f32 %v1313, 0.0
        %v1388 = vmax.f32 %v1316, 0.0
        %v1389 = vmax.f32 %v1321, 0.0
        %v1390 = vmax.f32 %v1324, 0.0
        %v1391 = vpack.c.bf16 %v1328, %v1327
        %v1392 = vpack.c.bf16 %v1330, %v1329
        %v1393 = vpack.c.bf16 %v1332, %v1331
        %v1394 = vpack.c.bf16 %v1334, %v1333
        %v1395 = vpack.c.bf16 %v1336, %v1335
        %v1396 = vpack.c.bf16 %v1338, %v1337
        %v1397 = vpack.c.bf16 %v1340, %v1339
        %v1398 = vpack.c.bf16 %v1342, %v1341
        %v1399 = vpack.c.bf16 %v1344, %v1343
        %v1400 = vpack.c.bf16 %v1346, %v1345
        %v1401 = vpack.c.bf16 %v1348, %v1347
        %v1402 = vpack.c.bf16 %v1350, %v1349
        %v1403 = vpack.c.bf16 %v1352, %v1351
        %v1404 = vpack.c.bf16 %v1354, %v1353
        %v1405 = vpack.c.bf16 %v1356, %v1355
        %v1406 = vpack.c.bf16 %v1358, %v1357
        %v1407 = vpack.c.bf16 %v1360, %v1359
        %v1408 = vpack.c.bf16 %v1362, %v1361
        %v1409 = vpack.c.bf16 %v1364, %v1363
        %v1410 = vpack.c.bf16 %v1366, %v1365
        %v1411 = vpack.c.bf16 %v1368, %v1367
        %v1412 = vpack.c.bf16 %v1370, %v1369
        %v1413 = vpack.c.bf16 %v1372, %v1371
        %v1414 = vpack.c.bf16 %v1374, %v1373
        %v1415 = vpack.c.bf16 %v1376, %v1375
        %v1416 = vpack.c.bf16 %v1378, %v1377
        %v1417 = vpack.c.bf16 %v1380, %v1379
        %v1418 = vpack.c.bf16 %v1382, %v1381
        %v1419 = vpack.c.bf16 %v1384, %v1383
        %v1420 = vpack.c.bf16 %v1386, %v1385
        %v1421 = vpack.c.bf16 %v1388, %v1387
        %v1422 = vpack.c.bf16 %v1390, %v1389
        %v1423 = vld [vmem:[%s5] sm:$0xf]
        %v1424 = vld [vmem:[%s5 + $0x4] sm:$0xf]
        %v1425 = vld [vmem:[%s5 + $0x8] sm:$0xf]
        %v1426 = vld [vmem:[%s5 + $0xc] sm:$0xf]
        %v1427 = vld [vmem:[%s6] sm:$0x1]
        %v1429 = vlaneseq
        %v1430 = vshrl.u32 %v1429, 7
        %v1431 = vsub.s32 0, %v1430
        %v1432 = vrot.slane %v1427, %v1431
        %v1438 = vunpack.c.l.b16 %v1423
        %v1439 = vunpack.c.l.b16 %v1424
        %v1440 = vunpack.c.l.b16 %v1425
        %v1441 = vunpack.c.l.b16 %v1426
        %v1442 = vpack.c.b16 %v1439, %v1438
        %v1443 = vpack.c.b16 %v1441, %v1440
        %vm1446 = vcmask 261120
        %v1448 = vsel %vm1446, %v1391, 0
        %v1451 = vsel %vm1446, %v1392, 0
        %v1454 = vsel %vm1446, %v1393, 0
        %v1457 = vsel %vm1446, %v1394, 0
        %v1460 = vsel %vm1446, %v1395, 0
        %v1463 = vsel %vm1446, %v1396, 0
        %v1466 = vsel %vm1446, %v1397, 0
        %v1469 = vsel %vm1446, %v1398, 0
        %v1472 = vsel %vm1446, %v1399, 0
        %v1475 = vsel %vm1446, %v1400, 0
        %v1478 = vsel %vm1446, %v1401, 0
        %v1481 = vsel %vm1446, %v1402, 0
        %v1484 = vsel %vm1446, %v1403, 0
        %v1487 = vsel %vm1446, %v1404, 0
        %v1490 = vsel %vm1446, %v1405, 0
        %v1493 = vsel %vm1446, %v1406, 0
        %v1496 = vsel %vm1446, %v1407, 0
        %v1499 = vsel %vm1446, %v1408, 0
        %v1502 = vsel %vm1446, %v1409, 0
        %v1505 = vsel %vm1446, %v1410, 0
        %v1508 = vsel %vm1446, %v1411, 0
        %v1511 = vsel %vm1446, %v1412, 0
        %v1514 = vsel %vm1446, %v1413, 0
        %v1517 = vsel %vm1446, %v1414, 0
        %v1520 = vsel %vm1446, %v1415, 0
        %v1523 = vsel %vm1446, %v1416, 0
        %v1526 = vsel %vm1446, %v1417, 0
        %v1529 = vsel %vm1446, %v1418, 0
        %v1532 = vsel %vm1446, %v1419, 0
        %v1535 = vsel %vm1446, %v1420, 0
        %v1538 = vsel %vm1446, %v1421, 0
        %v1541 = vsel %vm1446, %v1422, 0
        %1543 = vmatprep.subr.bf16.mxu0 0
        %1544 = vmatpush1.bf16.msra.mxu0 0
        %1545 = vmatprep.subr.bf16.mxu0 0
        %1546 = vmatpush1.bf16.msra.mxu0 0
        %1547 = vmatprep.subr.bf16.mxu0 0
        %1548 = vmatpush1.bf16.msra.mxu0 0
        %1549 = vmatprep.subr.bf16.mxu0 0
        %1550 = vmatpush1.bf16.msra.mxu0 0
        %1551 = vmatprep.subr.bf16.mxu0 0
        %1552 = vmatpush1.bf16.msra.mxu0 0
        %1553 = vmatprep.subr.bf16.mxu0 0
        %1554 = vmatpush1.bf16.msra.mxu0 0
        %1555 = vmatprep.subr.bf16.mxu0 0
        %1556 = vmatpush1.bf16.msra.mxu0 %v1443
        %1557 = vmatprep.subr.bf16.mxu0 0
        %1558 = vmatpush1.bf16.msra.mxu0 %v1442
        %1559 = vmatprep.subr.bf16.mxu0 0
        %1560 = vmatpush2.bf16.msra.mxu0 0
        %1561 = vmatprep.subr.bf16.mxu0 0
        %1562 = vmatpush2.bf16.msra.mxu0 0
        %1563 = vmatprep.subr.bf16.mxu0 0
        %1564 = vmatpush2.bf16.msra.mxu0 0
        %1565 = vmatprep.subr.bf16.mxu0 0
        %1566 = vmatpush2.bf16.msra.mxu0 0
        %1567 = vmatprep.subr.bf16.mxu0 0
        %1568 = vmatpush2.bf16.msra.mxu0 0
        %1569 = vmatprep.subr.bf16.mxu0 0
        %1570 = vmatpush2.bf16.msra.mxu0 0
        %1571 = vmatprep.subr.bf16.mxu0 0
        %1572 = vmatpush2.bf16.msra.mxu0 0
        %1573 = vmatprep.subr.bf16.mxu0 0
        %1574 = vmatpush2.bf16.msra.mxu0 0
        %1575 = vmatprep.mubr.bf16.mxu0 0
        %1576 = vmatmul.mubr.bf16.gmra.mxu0 %v1448
        %v1577 = vpop.f32.mrf.mxu0
        %v1578 = vadd.f32 %v1432, %v1577
        %v1579 = vpop.f32.mrf.mxu0
        %v1580 = vpop.f32.mrf.mxu0
        %v1581 = vadd.f32 %v1432, %v1580
        %v1582 = vpop.f32.mrf.mxu0
        %1583 = vmatprep.mubr.bf16.mxu0 0
        %1584 = vmatmul.mubr.bf16.gmra.mxu0 %v1451
        %v1585 = vpop.f32.mrf.mxu0
        %v1586 = vadd.f32 %v1432, %v1585
        %v1587 = vpop.f32.mrf.mxu0
        %v1588 = vpop.f32.mrf.mxu0
        %v1589 = vadd.f32 %v1432, %v1588
        %v1590 = vpop.f32.mrf.mxu0
        %1591 = vmatprep.mubr.bf16.mxu0 0
        %1592 = vmatmul.mubr.bf16.gmra.mxu0 %v1454
        %v1593 = vpop.f32.mrf.mxu0
        %v1594 = vadd.f32 %v1432, %v1593
        %v1595 = vpop.f32.mrf.mxu0
        %v1596 = vpop.f32.mrf.mxu0
        %v1597 = vadd.f32 %v1432, %v1596
        %v1598 = vpop.f32.mrf.mxu0
        %1599 = vmatprep.mubr.bf16.mxu0 0
        %1600 = vmatmul.mubr.bf16.gmra.mxu0 %v1457
        %v1601 = vpop.f32.mrf.mxu0
        %v1602 = vadd.f32 %v1432, %v1601
        %v1603 = vpop.f32.mrf.mxu0
        %v1604 = vpop.f32.mrf.mxu0
        %v1605 = vadd.f32 %v1432, %v1604
        %v1606 = vpop.f32.mrf.mxu0
        %1607 = vmatprep.mubr.bf16.mxu0 0
        %1608 = vmatmul.mubr.bf16.gmra.mxu0 %v1460
        %v1609 = vpop.f32.mrf.mxu0
        %v1610 = vadd.f32 %v1432, %v1609
        %v1611 = vpop.f32.mrf.mxu0
        %v1612 = vpop.f32.mrf.mxu0
        %v1613 = vadd.f32 %v1432, %v1612
        %v1614 = vpop.f32.mrf.mxu0
        %1615 = vmatprep.mubr.bf16.mxu0 0
        %1616 = vmatmul.mubr.bf16.gmra.mxu0 %v1463
        %v1617 = vpop.f32.mrf.mxu0
        %v1618 = vadd.f32 %v1432, %v1617
        %v1619 = vpop.f32.mrf.mxu0
        %v1620 = vpop.f32.mrf.mxu0
        %v1621 = vadd.f32 %v1432, %v1620
        %v1622 = vpop.f32.mrf.mxu0
        %1623 = vmatprep.mubr.bf16.mxu0 0
        %1624 = vmatmul.mubr.bf16.gmra.mxu0 %v1466
        %v1625 = vpop.f32.mrf.mxu0
        %v1626 = vadd.f32 %v1432, %v1625
        %v1627 = vpop.f32.mrf.mxu0
        %v1628 = vpop.f32.mrf.mxu0
        %v1629 = vadd.f32 %v1432, %v1628
        %v1630 = vpop.f32.mrf.mxu0
        %1631 = vmatprep.mubr.bf16.mxu0 0
        %1632 = vmatmul.mubr.bf16.gmra.mxu0 %v1469
        %v1633 = vpop.f32.mrf.mxu0
        %v1634 = vadd.f32 %v1432, %v1633
        %v1635 = vpop.f32.mrf.mxu0
        %v1636 = vpop.f32.mrf.mxu0
        %v1637 = vadd.f32 %v1432, %v1636
        %v1638 = vpop.f32.mrf.mxu0
        %1639 = vmatprep.mubr.bf16.mxu0 0
        %1640 = vmatmul.mubr.bf16.gmra.mxu0 %v1472
        %v1641 = vpop.f32.mrf.mxu0
        %v1642 = vadd.f32 %v1432, %v1641
        %v1643 = vpop.f32.mrf.mxu0
        %v1644 = vpop.f32.mrf.mxu0
        %v1645 = vadd.f32 %v1432, %v1644
        %v1646 = vpop.f32.mrf.mxu0
        %1647 = vmatprep.mubr.bf16.mxu0 0
        %1648 = vmatmul.mubr.bf16.gmra.mxu0 %v1475
        %v1649 = vpop.f32.mrf.mxu0
        %v1650 = vadd.f32 %v1432, %v1649
        %v1651 = vpop.f32.mrf.mxu0
        %v1652 = vpop.f32.mrf.mxu0
        %v1653 = vadd.f32 %v1432, %v1652
        %v1654 = vpop.f32.mrf.mxu0
        %1655 = vmatprep.mubr.bf16.mxu0 0
        %1656 = vmatmul.mubr.bf16.gmra.mxu0 %v1478
        %v1657 = vpop.f32.mrf.mxu0
        %v1658 = vadd.f32 %v1432, %v1657
        %v1659 = vpop.f32.mrf.mxu0
        %v1660 = vpop.f32.mrf.mxu0
        %v1661 = vadd.f32 %v1432, %v1660
        %v1662 = vpop.f32.mrf.mxu0
        %1663 = vmatprep.mubr.bf16.mxu0 0
        %1664 = vmatmul.mubr.bf16.gmra.mxu0 %v1481
        %v1665 = vpop.f32.mrf.mxu0
        %v1666 = vadd.f32 %v1432, %v1665
        %v1667 = vpop.f32.mrf.mxu0
        %v1668 = vpop.f32.mrf.mxu0
        %v1669 = vadd.f32 %v1432, %v1668
        %v1670 = vpop.f32.mrf.mxu0
        %1671 = vmatprep.mubr.bf16.mxu0 0
        %1672 = vmatmul.mubr.bf16.gmra.mxu0 %v1484
        %v1673 = vpop.f32.mrf.mxu0
        %v1674 = vadd.f32 %v1432, %v1673
        %v1675 = vpop.f32.mrf.mxu0
        %v1676 = vpop.f32.mrf.mxu0
        %v1677 = vadd.f32 %v1432, %v1676
        %v1678 = vpop.f32.mrf.mxu0
        %1679 = vmatprep.mubr.bf16.mxu0 0
        %1680 = vmatmul.mubr.bf16.gmra.mxu0 %v1487
        %v1681 = vpop.f32.mrf.mxu0
        %v1682 = vadd.f32 %v1432, %v1681
        %v1683 = vpop.f32.mrf.mxu0
        %v1684 = vpop.f32.mrf.mxu0
        %v1685 = vadd.f32 %v1432, %v1684
        %v1686 = vpop.f32.mrf.mxu0
        %1687 = vmatprep.mubr.bf16.mxu0 0
        %1688 = vmatmul.mubr.bf16.gmra.mxu0 %v1490
        %v1689 = vpop.f32.mrf.mxu0
        %v1690 = vadd.f32 %v1432, %v1689
        %v1691 = vpop.f32.mrf.mxu0
        %v1692 = vpop.f32.mrf.mxu0
        %v1693 = vadd.f32 %v1432, %v1692
        %v1694 = vpop.f32.mrf.mxu0
        %1695 = vmatprep.mubr.bf16.mxu0 0
        %1696 = vmatmul.mubr.bf16.gmra.mxu0 %v1493
        %v1697 = vpop.f32.mrf.mxu0
        %v1698 = vadd.f32 %v1432, %v1697
        %v1699 = vpop.f32.mrf.mxu0
        %v1700 = vpop.f32.mrf.mxu0
        %v1701 = vadd.f32 %v1432, %v1700
        %v1702 = vpop.f32.mrf.mxu0
        %1703 = vmatprep.mubr.bf16.mxu0 0
        %1704 = vmatmul.mubr.bf16.gmra.mxu0 %v1496
        %v1705 = vpop.f32.mrf.mxu0
        %v1706 = vadd.f32 %v1432, %v1705
        %v1707 = vpop.f32.mrf.mxu0
        %v1708 = vpop.f32.mrf.mxu0
        %v1709 = vadd.f32 %v1432, %v1708
        %v1710 = vpop.f32.mrf.mxu0
        %1711 = vmatprep.mubr.bf16.mxu0 0
        %1712 = vmatmul.mubr.bf16.gmra.mxu0 %v1499
        %v1713 = vpop.f32.mrf.mxu0
        %v1714 = vadd.f32 %v1432, %v1713
        %v1715 = vpop.f32.mrf.mxu0
        %v1716 = vpop.f32.mrf.mxu0
        %v1717 = vadd.f32 %v1432, %v1716
        %v1718 = vpop.f32.mrf.mxu0
        %1719 = vmatprep.mubr.bf16.mxu0 0
        %1720 = vmatmul.mubr.bf16.gmra.mxu0 %v1502
        %v1721 = vpop.f32.mrf.mxu0
        %v1722 = vadd.f32 %v1432, %v1721
        %v1723 = vpop.f32.mrf.mxu0
        %v1724 = vpop.f32.mrf.mxu0
        %v1725 = vadd.f32 %v1432, %v1724
        %v1726 = vpop.f32.mrf.mxu0
        %1727 = vmatprep.mubr.bf16.mxu0 0
        %1728 = vmatmul.mubr.bf16.gmra.mxu0 %v1505
        %v1729 = vpop.f32.mrf.mxu0
        %v1730 = vadd.f32 %v1432, %v1729
        %v1731 = vpop.f32.mrf.mxu0
        %v1732 = vpop.f32.mrf.mxu0
        %v1733 = vadd.f32 %v1432, %v1732
        %v1734 = vpop.f32.mrf.mxu0
        %1735 = vmatprep.mubr.bf16.mxu0 0
        %1736 = vmatmul.mubr.bf16.gmra.mxu0 %v1508
        %v1737 = vpop.f32.mrf.mxu0
        %v1738 = vadd.f32 %v1432, %v1737
        %v1739 = vpop.f32.mrf.mxu0
        %v1740 = vpop.f32.mrf.mxu0
        %v1741 = vadd.f32 %v1432, %v1740
        %v1742 = vpop.f32.mrf.mxu0
        %1743 = vmatprep.mubr.bf16.mxu0 0
        %1744 = vmatmul.mubr.bf16.gmra.mxu0 %v1511
        %v1745 = vpop.f32.mrf.mxu0
        %v1746 = vadd.f32 %v1432, %v1745
        %v1747 = vpop.f32.mrf.mxu0
        %v1748 = vpop.f32.mrf.mxu0
        %v1749 = vadd.f32 %v1432, %v1748
        %v1750 = vpop.f32.mrf.mxu0
        %1751 = vmatprep.mubr.bf16.mxu0 0
        %1752 = vmatmul.mubr.bf16.gmra.mxu0 %v1514
        %v1753 = vpop.f32.mrf.mxu0
        %v1754 = vadd.f32 %v1432, %v1753
        %v1755 = vpop.f32.mrf.mxu0
        %v1756 = vpop.f32.mrf.mxu0
        %v1757 = vadd.f32 %v1432, %v1756
        %v1758 = vpop.f32.mrf.mxu0
        %1759 = vmatprep.mubr.bf16.mxu0 0
        %1760 = vmatmul.mubr.bf16.gmra.mxu0 %v1517
        %v1761 = vpop.f32.mrf.mxu0
        %v1762 = vadd.f32 %v1432, %v1761
        %v1763 = vpop.f32.mrf.mxu0
        %v1764 = vpop.f32.mrf.mxu0
        %v1765 = vadd.f32 %v1432, %v1764
        %v1766 = vpop.f32.mrf.mxu0
        %1767 = vmatprep.mubr.bf16.mxu0 0
        %1768 = vmatmul.mubr.bf16.gmra.mxu0 %v1520
        %v1769 = vpop.f32.mrf.mxu0
        %v1770 = vadd.f32 %v1432, %v1769
        %v1771 = vpop.f32.mrf.mxu0
        %v1772 = vpop.f32.mrf.mxu0
        %v1773 = vadd.f32 %v1432, %v1772
        %v1774 = vpop.f32.mrf.mxu0
        %1775 = vmatprep.mubr.bf16.mxu0 0
        %1776 = vmatmul.mubr.bf16.gmra.mxu0 %v1523
        %v1777 = vpop.f32.mrf.mxu0
        %v1778 = vadd.f32 %v1432, %v1777
        %v1779 = vpop.f32.mrf.mxu0
        %v1780 = vpop.f32.mrf.mxu0
        %v1781 = vadd.f32 %v1432, %v1780
        %v1782 = vpop.f32.mrf.mxu0
        %1783 = vmatprep.mubr.bf16.mxu0 0
        %1784 = vmatmul.mubr.bf16.gmra.mxu0 %v1526
        %v1785 = vpop.f32.mrf.mxu0
        %v1786 = vadd.f32 %v1432, %v1785
        %v1787 = vpop.f32.mrf.mxu0
        %v1788 = vpop.f32.mrf.mxu0
        %v1789 = vadd.f32 %v1432, %v1788
        %v1790 = vpop.f32.mrf.mxu0
        %1791 = vmatprep.mubr.bf16.mxu0 0
        %1792 = vmatmul.mubr.bf16.gmra.mxu0 %v1529
        %v1793 = vpop.f32.mrf.mxu0
        %v1794 = vadd.f32 %v1432, %v1793
        %v1795 = vpop.f32.mrf.mxu0
        %v1796 = vpop.f32.mrf.mxu0
        %v1797 = vadd.f32 %v1432, %v1796
        %v1798 = vpop.f32.mrf.mxu0
        %1799 = vmatprep.mubr.bf16.mxu0 0
        %1800 = vmatmul.mubr.bf16.gmra.mxu0 %v1532
        %v1801 = vpop.f32.mrf.mxu0
        %v1802 = vadd.f32 %v1432, %v1801
        %v1803 = vpop.f32.mrf.mxu0
        %v1804 = vpop.f32.mrf.mxu0
        %v1805 = vadd.f32 %v1432, %v1804
        %v1806 = vpop.f32.mrf.mxu0
        %1807 = vmatprep.mubr.bf16.mxu0 0
        %1808 = vmatmul.mubr.bf16.gmra.mxu0 %v1535
        %v1809 = vpop.f32.mrf.mxu0
        %v1810 = vadd.f32 %v1432, %v1809
        %v1811 = vpop.f32.mrf.mxu0
        %v1812 = vpop.f32.mrf.mxu0
        %v1813 = vadd.f32 %v1432, %v1812
        %v1814 = vpop.f32.mrf.mxu0
        %1815 = vmatprep.mubr.bf16.mxu0 0
        %1816 = vmatmul.mubr.bf16.gmra.mxu0 %v1538
        %v1817 = vpop.f32.mrf.mxu0
        %v1818 = vadd.f32 %v1432, %v1817
        %v1819 = vpop.f32.mrf.mxu0
        %v1820 = vpop.f32.mrf.mxu0
        %v1821 = vadd.f32 %v1432, %v1820
        %v1822 = vpop.f32.mrf.mxu0
        %1823 = vmatprep.mubr.bf16.mxu0 0
        %1824 = vmatmul.mubr.bf16.gmra.mxu0 %v1541
        %v1825 = vpop.f32.mrf.mxu0
        %v1826 = vadd.f32 %v1432, %v1825
        %v1827 = vpop.f32.mrf.mxu0
        %v1828 = vpop.f32.mrf.mxu0
        %v1829 = vadd.f32 %v1432, %v1828
        %v1830 = vpop.f32.mrf.mxu0
        %1831 = vdwg.mxu0
        %v1832 = vtanh.pop %v1578
        %v1833 = vtanh.pop %v1581
        %v1834 = vtanh.pop %v1586
        %v1835 = vtanh.pop %v1589
        %v1836 = vtanh.pop %v1594
        %v1837 = vtanh.pop %v1597
        %v1838 = vtanh.pop %v1602
        %v1839 = vtanh.pop %v1605
        %v1840 = vtanh.pop %v1610
        %v1841 = vtanh.pop %v1613
        %v1842 = vtanh.pop %v1618
        %v1843 = vtanh.pop %v1621
        %v1844 = vtanh.pop %v1626
        %v1845 = vtanh.pop %v1629
        %v1846 = vtanh.pop %v1634
        %v1847 = vtanh.pop %v1637
        %v1848 = vtanh.pop %v1642
        %v1849 = vtanh.pop %v1645
        %v1850 = vtanh.pop %v1650
        %v1851 = vtanh.pop %v1653
        %v1852 = vtanh.pop %v1658
        %v1853 = vtanh.pop %v1661
        %v1854 = vtanh.pop %v1666
        %v1855 = vtanh.pop %v1669
        %v1856 = vtanh.pop %v1674
        %v1857 = vtanh.pop %v1677
        %v1858 = vtanh.pop %v1682
        %v1859 = vtanh.pop %v1685
        %v1860 = vtanh.pop %v1690
        %v1861 = vtanh.pop %v1693
        %v1862 = vtanh.pop %v1698
        %v1863 = vtanh.pop %v1701
        %v1864 = vtanh.pop %v1706
        %v1865 = vtanh.pop %v1709
        %v1866 = vtanh.pop %v1714
        %v1867 = vtanh.pop %v1717
        %v1868 = vtanh.pop %v1722
        %v1869 = vtanh.pop %v1725
        %v1870 = vtanh.pop %v1730
        %v1871 = vtanh.pop %v1733
        %v1872 = vtanh.pop %v1738
        %v1873 = vtanh.pop %v1741
        %v1874 = vtanh.pop %v1746
        %v1875 = vtanh.pop %v1749
        %v1876 = vtanh.pop %v1754
        %v1877 = vtanh.pop %v1757
        %v1878 = vtanh.pop %v1762
        %v1879 = vtanh.pop %v1765
        %v1880 = vtanh.pop %v1770
        %v1881 = vtanh.pop %v1773
        %v1882 = vtanh.pop %v1778
        %v1883 = vtanh.pop %v1781
        %v1884 = vtanh.pop %v1786
        %v1885 = vtanh.pop %v1789
        %v1886 = vtanh.pop %v1794
        %v1887 = vtanh.pop %v1797
        %v1888 = vtanh.pop %v1802
        %v1889 = vtanh.pop %v1805
        %v1890 = vtanh.pop %v1810
        %v1891 = vtanh.pop %v1813
        %v1892 = vtanh.pop %v1818
        %v1893 = vtanh.pop %v1821
        %v1894 = vtanh.pop %v1826
        %v1895 = vtanh.pop %v1829
        %vm1896 = vcmask 15360
        %1897 = vst.msk [vmem:[%s280] sm:$0xff] %vm1896, %v1832
        %1898 = vst.msk [vmem:[%s280 + $0x8] sm:$0xff] %vm1896, %v1833
        %1899 = vst.msk [vmem:[%s280 + $0x10] sm:$0xff] %vm1896, %v1834
        %1900 = vst.msk [vmem:[%s280 + $0x18] sm:$0xff] %vm1896, %v1835
        %1901 = vst.msk [vmem:[%s280 + $0x20] sm:$0xff] %vm1896, %v1836
        %1902 = vst.msk [vmem:[%s280 + $0x28] sm:$0xff] %vm1896, %v1837
        %1903 = vst.msk [vmem:[%s280 + $0x30] sm:$0xff] %vm1896, %v1838
        %1904 = vst.msk [vmem:[%s280 + $0x38] sm:$0xff] %vm1896, %v1839
        %1905 = vst.msk [vmem:[%s280 + $0x40] sm:$0xff] %vm1896, %v1840
        %1906 = vst.msk [vmem:[%s280 + $0x48] sm:$0xff] %vm1896, %v1841
        %1907 = vst.msk [vmem:[%s280 + $0x50] sm:$0xff] %vm1896, %v1842
        %1908 = vst.msk [vmem:[%s280 + $0x58] sm:$0xff] %vm1896, %v1843
        %1909 = vst.msk [vmem:[%s280 + $0x60] sm:$0xff] %vm1896, %v1844
        %1910 = vst.msk [vmem:[%s280 + $0x68] sm:$0xff] %vm1896, %v1845
        %1911 = vst.msk [vmem:[%s280 + $0x70] sm:$0xff] %vm1896, %v1846
        %1912 = vst.msk [vmem:[%s280 + $0x78] sm:$0xff] %vm1896, %v1847
        %1913 = vst.msk [vmem:[%s280 + $0x80] sm:$0xff] %vm1896, %v1848
        %1914 = vst.msk [vmem:[%s280 + $0x88] sm:$0xff] %vm1896, %v1849
        %1915 = vst.msk [vmem:[%s280 + $0x90] sm:$0xff] %vm1896, %v1850
        %1916 = vst.msk [vmem:[%s280 + $0x98] sm:$0xff] %vm1896, %v1851
        %1917 = vst.msk [vmem:[%s280 + $0xa0] sm:$0xff] %vm1896, %v1852
        %1918 = vst.msk [vmem:[%s280 + $0xa8] sm:$0xff] %vm1896, %v1853
        %1919 = vst.msk [vmem:[%s280 + $0xb0] sm:$0xff] %vm1896, %v1854
        %1920 = vst.msk [vmem:[%s280 + $0xb8] sm:$0xff] %vm1896, %v1855
        %1921 = vst.msk [vmem:[%s280 + $0xc0] sm:$0xff] %vm1896, %v1856
        %1922 = vst.msk [vmem:[%s280 + $0xc8] sm:$0xff] %vm1896, %v1857
        %1923 = vst.msk [vmem:[%s280 + $0xd0] sm:$0xff] %vm1896, %v1858
        %1924 = vst.msk [vmem:[%s280 + $0xd8] sm:$0xff] %vm1896, %v1859
        %1925 = vst.msk [vmem:[%s280 + $0xe0] sm:$0xff] %vm1896, %v1860
        %1926 = vst.msk [vmem:[%s280 + $0xe8] sm:$0xff] %vm1896, %v1861
        %1927 = vst.msk [vmem:[%s280 + $0xf0] sm:$0xff] %vm1896, %v1862
        %1928 = vst.msk [vmem:[%s280 + $0xf8] sm:$0xff] %vm1896, %v1863
        %1929 = vst.msk [vmem:[%s280 + $0x100] sm:$0xff] %vm1896, %v1864
        %1930 = vst.msk [vmem:[%s280 + $0x108] sm:$0xff] %vm1896, %v1865
        %1931 = vst.msk [vmem:[%s280 + $0x110] sm:$0xff] %vm1896, %v1866
        %1932 = vst.msk [vmem:[%s280 + $0x118] sm:$0xff] %vm1896, %v1867
        %1933 = vst.msk [vmem:[%s280 + $0x120] sm:$0xff] %vm1896, %v1868
        %1934 = vst.msk [vmem:[%s280 + $0x128] sm:$0xff] %vm1896, %v1869
        %1935 = vst.msk [vmem:[%s280 + $0x130] sm:$0xff] %vm1896, %v1870
        %1936 = vst.msk [vmem:[%s280 + $0x138] sm:$0xff] %vm1896, %v1871
        %1937 = vst.msk [vmem:[%s280 + $0x140] sm:$0xff] %vm1896, %v1872
        %1938 = vst.msk [vmem:[%s280 + $0x148] sm:$0xff] %vm1896, %v1873
        %1939 = vst.msk [vmem:[%s280 + $0x150] sm:$0xff] %vm1896, %v1874
        %1940 = vst.msk [vmem:[%s280 + $0x158] sm:$0xff] %vm1896, %v1875
        %1941 = vst.msk [vmem:[%s280 + $0x160] sm:$0xff] %vm1896, %v1876
        %1942 = vst.msk [vmem:[%s280 + $0x168] sm:$0xff] %vm1896, %v1877
        %1943 = vst.msk [vmem:[%s280 + $0x170] sm:$0xff] %vm1896, %v1878
        %1944 = vst.msk [vmem:[%s280 + $0x178] sm:$0xff] %vm1896, %v1879
        %1945 = vst.msk [vmem:[%s280 + $0x180] sm:$0xff] %vm1896, %v1880
        %1946 = vst.msk [vmem:[%s280 + $0x188] sm:$0xff] %vm1896, %v1881
        %1947 = vst.msk [vmem:[%s280 + $0x190] sm:$0xff] %vm1896, %v1882
        %1948 = vst.msk [vmem:[%s280 + $0x198] sm:$0xff] %vm1896, %v1883
        %1949 = vst.msk [vmem:[%s280 + $0x1a0] sm:$0xff] %vm1896, %v1884
        %1950 = vst.msk [vmem:[%s280 + $0x1a8] sm:$0xff] %vm1896, %v1885
        %1951 = vst.msk [vmem:[%s280 + $0x1b0] sm:$0xff] %vm1896, %v1886
        %1952 = vst.msk [vmem:[%s280 + $0x1b8] sm:$0xff] %vm1896, %v1887
        %1953 = vst.msk [vmem:[%s280 + $0x1c0] sm:$0xff] %vm1896, %v1888
        %1954 = vst.msk [vmem:[%s280 + $0x1c8] sm:$0xff] %vm1896, %v1889
        %1955 = vst.msk [vmem:[%s280 + $0x1d0] sm:$0xff] %vm1896, %v1890
        %1956 = vst.msk [vmem:[%s280 + $0x1d8] sm:$0xff] %vm1896, %v1891
        %1957 = vst.msk [vmem:[%s280 + $0x1e0] sm:$0xff] %vm1896, %v1892
        %1958 = vst.msk [vmem:[%s280 + $0x1e8] sm:$0xff] %vm1896, %v1893
        %1959 = vst.msk [vmem:[%s280 + $0x1f0] sm:$0xff] %vm1896, %v1894
        %1960 = vst.msk [vmem:[%s280 + $0x1f8] sm:$0xff] %vm1896, %v1895
        %s1961 = sand.u32 %s178, 1
        %s1962 = sand.u32 %s178, 1
        %s1963 = smul.addr %s1962, 512
        %s1964 = scalar_lea.vmem [#allocation2], %s1963
        // Predicated region
        $region49: #{actor_forward.1} parent=47 // pred_check
          %p1965 = pneg %p188
        $region50: #{actor_forward.1} parent=47 // pred_check_branch
          %1967 = sbr.rel (%p1965) target = $region52
        $region51: #{actor_forward.1} parent=47 // pred_region
          %s1968 = smul.u32 64, %s18
          %s1969 = ssub.s32 65, %s1968
          %p1970 = scmp.lt.s32.totalorder %s1969, 64
          %s1971 = scalar_select %p1970, %s1969, 64
          %s1972 = smul.u32 128, %s1971
          %p1973 = scmp.ne.s32.totalorder 0, %s1972
          %s1974 = smul.addr %s1968, 8
          %s1975 = scalar_lea.vmem %s7, %s1974
          // Predicated region
          $region53: #{actor_forward.1} parent=51 // pred_check
            %p1976 = pneg %p1973
          $region54: #{actor_forward.1} parent=51 // pred_check_branch
            %1978 = sbr.rel (%p1976) target = $region56
          $region55: #{actor_forward.1} parent=51 // pred_region
            // Predicated region
            $region57: #{actor_forward.1} parent=55 // pred_check
              _
            $region58: #{actor_forward.1} parent=55 // pred_check_branch
              %1980 = sbr.rel (0) target = $region60
            $region59: #{actor_forward.1} parent=55 // pred_region
              // Predicated region
              $region79: #{actor_forward.1} parent=59 // pred_check
                _
              $region80: #{actor_forward.1} parent=59 // pred_check_branch
                %2156 = sbr.rel (0) target = $region82
              $region81: #{actor_forward.1} parent=59 // pred_region
                %s2157 = sshrl.u32 %s1971, 6
                // While loop
                $region83: #{actor_forward.1} parent=81 // loop_pre_header
                  _
                $region84: #{actor_forward.1} parent=81 // loop_header
                  %s2159 = sphi 0, %s2161
                  %p2160 = scmp.ge.s32.totalorder %s2159, %s2157
                  %s2164 = sphi 0, %s2297
                  %s2165 = sphi %s1964, %s2300
                  %s2166 = sphi %s1975, %s2301
                $region85: #{actor_forward.1} parent=81 // loop_header_branch
                  %2163 = sbr.rel (%p2160) target = $region89
                $region86: #{actor_forward.1} parent=81 // loop_body
                  %v2167 = vld [vmem:[%s2165] sm:$0xff]
                  %2168 = vst [vmem:[%s2166] sm:$0xff] %v2167
                  %v2169 = vld [vmem:[%s2165 + $0x8] sm:$0xff]
                  %2170 = vst [vmem:[%s2166 + $0x8] sm:$0xff] %v2169
                  %v2171 = vld [vmem:[%s2165 + $0x10] sm:$0xff]
                  %2172 = vst [vmem:[%s2166 + $0x10] sm:$0xff] %v2171
                  %v2173 = vld [vmem:[%s2165 + $0x18] sm:$0xff]
                  %2174 = vst [vmem:[%s2166 + $0x18] sm:$0xff] %v2173
                  %v2175 = vld [vmem:[%s2165 + $0x20] sm:$0xff]
                  %2176 = vst [vmem:[%s2166 + $0x20] sm:$0xff] %v2175
                  %v2177 = vld [vmem:[%s2165 + $0x28] sm:$0xff]
                  %2178 = vst [vmem:[%s2166 + $0x28] sm:$0xff] %v2177
                  %v2179 = vld [vmem:[%s2165 + $0x30] sm:$0xff]
                  %2180 = vst [vmem:[%s2166 + $0x30] sm:$0xff] %v2179
                  %v2181 = vld [vmem:[%s2165 + $0x38] sm:$0xff]
                  %2182 = vst [vmem:[%s2166 + $0x38] sm:$0xff] %v2181
                  %v2183 = vld [vmem:[%s2165 + $0x40] sm:$0xff]
                  %2184 = vst [vmem:[%s2166 + $0x40] sm:$0xff] %v2183
                  %v2185 = vld [vmem:[%s2165 + $0x48] sm:$0xff]
                  %2186 = vst [vmem:[%s2166 + $0x48] sm:$0xff] %v2185
                  %v2187 = vld [vmem:[%s2165 + $0x50] sm:$0xff]
                  %2188 = vst [vmem:[%s2166 + $0x50] sm:$0xff] %v2187
                  %v2189 = vld [vmem:[%s2165 + $0x58] sm:$0xff]
                  %2190 = vst [vmem:[%s2166 + $0x58] sm:$0xff] %v2189
                  %v2191 = vld [vmem:[%s2165 + $0x60] sm:$0xff]
                  %2192 = vst [vmem:[%s2166 + $0x60] sm:$0xff] %v2191
                  %v2193 = vld [vmem:[%s2165 + $0x68] sm:$0xff]
                  %2194 = vst [vmem:[%s2166 + $0x68] sm:$0xff] %v2193
                  %v2195 = vld [vmem:[%s2165 + $0x70] sm:$0xff]
                  %2196 = vst [vmem:[%s2166 + $0x70] sm:$0xff] %v2195
                  %v2197 = vld [vmem:[%s2165 + $0x78] sm:$0xff]
                  %2198 = vst [vmem:[%s2166 + $0x78] sm:$0xff] %v2197
                  %v2199 = vld [vmem:[%s2165 + $0x80] sm:$0xff]
                  %2200 = vst [vmem:[%s2166 + $0x80] sm:$0xff] %v2199
                  %v2201 = vld [vmem:[%s2165 + $0x88] sm:$0xff]
                  %2202 = vst [vmem:[%s2166 + $0x88] sm:$0xff] %v2201
                  %v2203 = vld [vmem:[%s2165 + $0x90] sm:$0xff]
                  %2204 = vst [vmem:[%s2166 + $0x90] sm:$0xff] %v2203
                  %v2205 = vld [vmem:[%s2165 + $0x98] sm:$0xff]
                  %2206 = vst [vmem:[%s2166 + $0x98] sm:$0xff] %v2205
                  %v2207 = vld [vmem:[%s2165 + $0xa0] sm:$0xff]
                  %2208 = vst [vmem:[%s2166 + $0xa0] sm:$0xff] %v2207
                  %v2209 = vld [vmem:[%s2165 + $0xa8] sm:$0xff]
                  %2210 = vst [vmem:[%s2166 + $0xa8] sm:$0xff] %v2209
                  %v2211 = vld [vmem:[%s2165 + $0xb0] sm:$0xff]
                  %2212 = vst [vmem:[%s2166 + $0xb0] sm:$0xff] %v2211
                  %v2213 = vld [vmem:[%s2165 + $0xb8] sm:$0xff]
                  %2214 = vst [vmem:[%s2166 + $0xb8] sm:$0xff] %v2213
                  %v2215 = vld [vmem:[%s2165 + $0xc0] sm:$0xff]
                  %2216 = vst [vmem:[%s2166 + $0xc0] sm:$0xff] %v2215
                  %v2217 = vld [vmem:[%s2165 + $0xc8] sm:$0xff]
                  %2218 = vst [vmem:[%s2166 + $0xc8] sm:$0xff] %v2217
                  %v2219 = vld [vmem:[%s2165 + $0xd0] sm:$0xff]
                  %2220 = vst [vmem:[%s2166 + $0xd0] sm:$0xff] %v2219
                  %v2221 = vld [vmem:[%s2165 + $0xd8] sm:$0xff]
                  %2222 = vst [vmem:[%s2166 + $0xd8] sm:$0xff] %v2221
                  %v2223 = vld [vmem:[%s2165 + $0xe0] sm:$0xff]
                  %2224 = vst [vmem:[%s2166 + $0xe0] sm:$0xff] %v2223
                  %v2225 = vld [vmem:[%s2165 + $0xe8] sm:$0xff]
                  %2226 = vst [vmem:[%s2166 + $0xe8] sm:$0xff] %v2225
                  %v2227 = vld [vmem:[%s2165 + $0xf0] sm:$0xff]
                  %2228 = vst [vmem:[%s2166 + $0xf0] sm:$0xff] %v2227
                  %v2229 = vld [vmem:[%s2165 + $0xf8] sm:$0xff]
                  %2230 = vst [vmem:[%s2166 + $0xf8] sm:$0xff] %v2229
                  %v2231 = vld [vmem:[%s2165 + $0x100] sm:$0xff]
                  %2232 = vst [vmem:[%s2166 + $0x100] sm:$0xff] %v2231
                  %v2233 = vld [vmem:[%s2165 + $0x108] sm:$0xff]
                  %2234 = vst [vmem:[%s2166 + $0x108] sm:$0xff] %v2233
                  %v2235 = vld [vmem:[%s2165 + $0x110] sm:$0xff]
                  %2236 = vst [vmem:[%s2166 + $0x110] sm:$0xff] %v2235
                  %v2237 = vld [vmem:[%s2165 + $0x118] sm:$0xff]
                  %2238 = vst [vmem:[%s2166 + $0x118] sm:$0xff] %v2237
                  %v2239 = vld [vmem:[%s2165 + $0x120] sm:$0xff]
                  %2240 = vst [vmem:[%s2166 + $0x120] sm:$0xff] %v2239
                  %v2241 = vld [vmem:[%s2165 + $0x128] sm:$0xff]
                  %2242 = vst [vmem:[%s2166 + $0x128] sm:$0xff] %v2241
                  %v2243 = vld [vmem:[%s2165 + $0x130] sm:$0xff]
                  %2244 = vst [vmem:[%s2166 + $0x130] sm:$0xff] %v2243
                  %v2245 = vld [vmem:[%s2165 + $0x138] sm:$0xff]
                  %2246 = vst [vmem:[%s2166 + $0x138] sm:$0xff] %v2245
                  %v2247 = vld [vmem:[%s2165 + $0x140] sm:$0xff]
                  %2248 = vst [vmem:[%s2166 + $0x140] sm:$0xff] %v2247
                  %v2249 = vld [vmem:[%s2165 + $0x148] sm:$0xff]
                  %2250 = vst [vmem:[%s2166 + $0x148] sm:$0xff] %v2249
                  %v2251 = vld [vmem:[%s2165 + $0x150] sm:$0xff]
                  %2252 = vst [vmem:[%s2166 + $0x150] sm:$0xff] %v2251
                  %v2253 = vld [vmem:[%s2165 + $0x158] sm:$0xff]
                  %2254 = vst [vmem:[%s2166 + $0x158] sm:$0xff] %v2253
                  %v2255 = vld [vmem:[%s2165 + $0x160] sm:$0xff]
                  %2256 = vst [vmem:[%s2166 + $0x160] sm:$0xff] %v2255
                  %v2257 = vld [vmem:[%s2165 + $0x168] sm:$0xff]
                  %2258 = vst [vmem:[%s2166 + $0x168] sm:$0xff] %v2257
                  %v2259 = vld [vmem:[%s2165 + $0x170] sm:$0xff]
                  %2260 = vst [vmem:[%s2166 + $0x170] sm:$0xff] %v2259
                  %v2261 = vld [vmem:[%s2165 + $0x178] sm:$0xff]
                  %2262 = vst [vmem:[%s2166 + $0x178] sm:$0xff] %v2261
                  %v2263 = vld [vmem:[%s2165 + $0x180] sm:$0xff]
                  %2264 = vst [vmem:[%s2166 + $0x180] sm:$0xff] %v2263
                  %v2265 = vld [vmem:[%s2165 + $0x188] sm:$0xff]
                  %2266 = vst [vmem:[%s2166 + $0x188] sm:$0xff] %v2265
                  %v2267 = vld [vmem:[%s2165 + $0x190] sm:$0xff]
                  %2268 = vst [vmem:[%s2166 + $0x190] sm:$0xff] %v2267
                  %v2269 = vld [vmem:[%s2165 + $0x198] sm:$0xff]
                  %2270 = vst [vmem:[%s2166 + $0x198] sm:$0xff] %v2269
                  %v2271 = vld [vmem:[%s2165 + $0x1a0] sm:$0xff]
                  %2272 = vst [vmem:[%s2166 + $0x1a0] sm:$0xff] %v2271
                  %v2273 = vld [vmem:[%s2165 + $0x1a8] sm:$0xff]
                  %2274 = vst [vmem:[%s2166 + $0x1a8] sm:$0xff] %v2273
                  %v2275 = vld [vmem:[%s2165 + $0x1b0] sm:$0xff]
                  %2276 = vst [vmem:[%s2166 + $0x1b0] sm:$0xff] %v2275
                  %v2277 = vld [vmem:[%s2165 + $0x1b8] sm:$0xff]
                  %2278 = vst [vmem:[%s2166 + $0x1b8] sm:$0xff] %v2277
                  %v2279 = vld [vmem:[%s2165 + $0x1c0] sm:$0xff]
                  %2280 = vst [vmem:[%s2166 + $0x1c0] sm:$0xff] %v2279
                  %v2281 = vld [vmem:[%s2165 + $0x1c8] sm:$0xff]
                  %2282 = vst [vmem:[%s2166 + $0x1c8] sm:$0xff] %v2281
                  %v2283 = vld [vmem:[%s2165 + $0x1d0] sm:$0xff]
                  %2284 = vst [vmem:[%s2166 + $0x1d0] sm:$0xff] %v2283
                  %v2285 = vld [vmem:[%s2165 + $0x1d8] sm:$0xff]
                  %2286 = vst [vmem:[%s2166 + $0x1d8] sm:$0xff] %v2285
                  %v2287 = vld [vmem:[%s2165 + $0x1e0] sm:$0xff]
                  %2288 = vst [vmem:[%s2166 + $0x1e0] sm:$0xff] %v2287
                  %v2289 = vld [vmem:[%s2165 + $0x1e8] sm:$0xff]
                  %2290 = vst [vmem:[%s2166 + $0x1e8] sm:$0xff] %v2289
                  %v2291 = vld [vmem:[%s2165 + $0x1f0] sm:$0xff]
                  %2292 = vst [vmem:[%s2166 + $0x1f0] sm:$0xff] %v2291
                  %v2293 = vld [vmem:[%s2165 + $0x1f8] sm:$0xff]
                  %2294 = vst [vmem:[%s2166 + $0x1f8] sm:$0xff] %v2293
                  %s2295 = sadd.s32 1, %s2164
                  %p2296 = scmp.ge.s32.totalorder %s2295, %s2157
                  %s2297 = scalar_select %p2296, 0, %s2295
                  %s2298 = smul.u32 %s2297, 512
                  %s2299 = smul.u32 %s2297, 512
                  %s2300 = scalar_lea.vmem %s1964, %s2298 [#allocation2]
                  %s2301 = scalar_lea.vmem %s1975, %s2299
                $region87: #{actor_forward.1} parent=81 // loop_footer
                  %s2161 = sadd.s32 %s2159, 1
                $region88: #{actor_forward.1} parent=81 // loop_footer_branch
                  %2158 = sbr.rel target = $region84
                $region89: #{actor_forward.1} parent=81 // loop_exit
                  _
                %s2302 = sshrl.u32 %s1971, 6
                %s2303 = sand.u32 %s1971, 63
                %s2304 = smul.u32 %s2302, 64
                %s2305 = smul.u32 8, %s2304
                %s2306 = scalar_lea.vmem %s1964, %s2305 [#allocation2]
                %s2307 = smul.u32 8, %s2304
                %s2308 = scalar_lea.vmem %s1975, %s2307
                // While loop
                $region90: #{actor_forward.1} parent=81 // loop_pre_header
                  _
                $region91: #{actor_forward.1} parent=81 // loop_header
                  %s2310 = sphi 0, %s2312
                  %p2311 = scmp.ge.s32.totalorder %s2310, %s2303
                  %s2315 = sphi 0, %s2322
                  %s2316 = sphi %s2306, %s2325
                  %s2317 = sphi %s2308, %s2326
                $region92: #{actor_forward.1} parent=81 // loop_header_branch
                  %2314 = sbr.rel (%p2311) target = $region96
                $region93: #{actor_forward.1} parent=81 // loop_body
                  %v2318 = vld [vmem:[%s2316] sm:$0xff]
                  %2319 = vst [vmem:[%s2317] sm:$0xff] %v2318
                  %s2320 = sadd.s32 1, %s2315
                  %p2321 = scmp.ge.s32.totalorder %s2320, %s2303
                  %s2322 = scalar_select %p2321, 0, %s2320
                  %s2323 = smul.u32 %s2322, 8
                  %s2324 = smul.u32 %s2322, 8
                  %s2325 = scalar_lea.vmem %s2306, %s2323 [#allocation2]
                  %s2326 = scalar_lea.vmem %s2308, %s2324
                $region94: #{actor_forward.1} parent=81 // loop_footer
                  %s2312 = sadd.s32 %s2310, 1
                $region95: #{actor_forward.1} parent=81 // loop_footer_branch
                  %2309 = sbr.rel target = $region91
                $region96: #{actor_forward.1} parent=81 // loop_exit
                  _
              $region82: #{actor_forward.1} parent=59 // pred_fallthru
                _
              // Predicated region
              $region97: #{actor_forward.1} parent=59 // pred_check
                _
              $region98: #{actor_forward.1} parent=59 // pred_check_branch
                %2328 = sbr.rel target = $region100
              $region99: #{actor_forward.1} parent=59 // pred_region
                _
              $region100: #{actor_forward.1} parent=59 // pred_fallthru
                _
            $region60: #{actor_forward.1} parent=55 // pred_fallthru
              _
            // Predicated region
            $region61: #{actor_forward.1} parent=55 // pred_check
              _
            $region62: #{actor_forward.1} parent=55 // pred_check_branch
              %1982 = sbr.rel target = $region64
            $region63: #{actor_forward.1} parent=55 // pred_region
              %s1984 = ssub.s32 256, 1
              %s1985 = sshrl.u32 %s1971, 6
              // While loop
              $region65: #{actor_forward.1} parent=63 // loop_pre_header
                _
              $region66: #{actor_forward.1} parent=63 // loop_header
                %s1987 = sphi 0, %s1989
                %p1988 = scmp.ge.s32.totalorder %s1987, %s1985
                %s1992 = sphi 0, %s2125
                %s1993 = sphi %s1964, %s2128
                %s1994 = sphi %s1975, %s2129
              $region67: #{actor_forward.1} parent=63 // loop_header_branch
                %1991 = sbr.rel (%p1988) target = $region71
              $region68: #{actor_forward.1} parent=63 // loop_body
                %v1995 = vld [vmem:[%s1993] sm:%s1984]
                %1996 = vst [vmem:[%s1994] sm:%s1984] %v1995
                %v1997 = vld [vmem:[%s1993 + $0x8] sm:%s1984]
                %1998 = vst [vmem:[%s1994 + $0x8] sm:%s1984] %v1997
                %v1999 = vld [vmem:[%s1993 + $0x10] sm:%s1984]
                %2000 = vst [vmem:[%s1994 + $0x10] sm:%s1984] %v1999
                %v2001 = vld [vmem:[%s1993 + $0x18] sm:%s1984]
                %2002 = vst [vmem:[%s1994 + $0x18] sm:%s1984] %v2001
                %v2003 = vld [vmem:[%s1993 + $0x20] sm:%s1984]
                %2004 = vst [vmem:[%s1994 + $0x20] sm:%s1984] %v2003
                %v2005 = vld [vmem:[%s1993 + $0x28] sm:%s1984]
                %2006 = vst [vmem:[%s1994 + $0x28] sm:%s1984] %v2005
                %v2007 = vld [vmem:[%s1993 + $0x30] sm:%s1984]
                %2008 = vst [vmem:[%s1994 + $0x30] sm:%s1984] %v2007
                %v2009 = vld [vmem:[%s1993 + $0x38] sm:%s1984]
                %2010 = vst [vmem:[%s1994 + $0x38] sm:%s1984] %v2009
                %v2011 = vld [vmem:[%s1993 + $0x40] sm:%s1984]
                %2012 = vst [vmem:[%s1994 + $0x40] sm:%s1984] %v2011
                %v2013 = vld [vmem:[%s1993 + $0x48] sm:%s1984]
                %2014 = vst [vmem:[%s1994 + $0x48] sm:%s1984] %v2013
                %v2015 = vld [vmem:[%s1993 + $0x50] sm:%s1984]
                %2016 = vst [vmem:[%s1994 + $0x50] sm:%s1984] %v2015
                %v2017 = vld [vmem:[%s1993 + $0x58] sm:%s1984]
                %2018 = vst [vmem:[%s1994 + $0x58] sm:%s1984] %v2017
                %v2019 = vld [vmem:[%s1993 + $0x60] sm:%s1984]
                %2020 = vst [vmem:[%s1994 + $0x60] sm:%s1984] %v2019
                %v2021 = vld [vmem:[%s1993 + $0x68] sm:%s1984]
                %2022 = vst [vmem:[%s1994 + $0x68] sm:%s1984] %v2021
                %v2023 = vld [vmem:[%s1993 + $0x70] sm:%s1984]
                %2024 = vst [vmem:[%s1994 + $0x70] sm:%s1984] %v2023
                %v2025 = vld [vmem:[%s1993 + $0x78] sm:%s1984]
                %2026 = vst [vmem:[%s1994 + $0x78] sm:%s1984] %v2025
                %v2027 = vld [vmem:[%s1993 + $0x80] sm:%s1984]
                %2028 = vst [vmem:[%s1994 + $0x80] sm:%s1984] %v2027
                %v2029 = vld [vmem:[%s1993 + $0x88] sm:%s1984]
                %2030 = vst [vmem:[%s1994 + $0x88] sm:%s1984] %v2029
                %v2031 = vld [vmem:[%s1993 + $0x90] sm:%s1984]
                %2032 = vst [vmem:[%s1994 + $0x90] sm:%s1984] %v2031
                %v2033 = vld [vmem:[%s1993 + $0x98] sm:%s1984]
                %2034 = vst [vmem:[%s1994 + $0x98] sm:%s1984] %v2033
                %v2035 = vld [vmem:[%s1993 + $0xa0] sm:%s1984]
                %2036 = vst [vmem:[%s1994 + $0xa0] sm:%s1984] %v2035
                %v2037 = vld [vmem:[%s1993 + $0xa8] sm:%s1984]
                %2038 = vst [vmem:[%s1994 + $0xa8] sm:%s1984] %v2037
                %v2039 = vld [vmem:[%s1993 + $0xb0] sm:%s1984]
                %2040 = vst [vmem:[%s1994 + $0xb0] sm:%s1984] %v2039
                %v2041 = vld [vmem:[%s1993 + $0xb8] sm:%s1984]
                %2042 = vst [vmem:[%s1994 + $0xb8] sm:%s1984] %v2041
                %v2043 = vld [vmem:[%s1993 + $0xc0] sm:%s1984]
                %2044 = vst [vmem:[%s1994 + $0xc0] sm:%s1984] %v2043
                %v2045 = vld [vmem:[%s1993 + $0xc8] sm:%s1984]
                %2046 = vst [vmem:[%s1994 + $0xc8] sm:%s1984] %v2045
                %v2047 = vld [vmem:[%s1993 + $0xd0] sm:%s1984]
                %2048 = vst [vmem:[%s1994 + $0xd0] sm:%s1984] %v2047
                %v2049 = vld [vmem:[%s1993 + $0xd8] sm:%s1984]
                %2050 = vst [vmem:[%s1994 + $0xd8] sm:%s1984] %v2049
                %v2051 = vld [vmem:[%s1993 + $0xe0] sm:%s1984]
                %2052 = vst [vmem:[%s1994 + $0xe0] sm:%s1984] %v2051
                %v2053 = vld [vmem:[%s1993 + $0xe8] sm:%s1984]
                %2054 = vst [vmem:[%s1994 + $0xe8] sm:%s1984] %v2053
                %v2055 = vld [vmem:[%s1993 + $0xf0] sm:%s1984]
                %2056 = vst [vmem:[%s1994 + $0xf0] sm:%s1984] %v2055
                %v2057 = vld [vmem:[%s1993 + $0xf8] sm:%s1984]
                %2058 = vst [vmem:[%s1994 + $0xf8] sm:%s1984] %v2057
                %v2059 = vld [vmem:[%s1993 + $0x100] sm:%s1984]
                %2060 = vst [vmem:[%s1994 + $0x100] sm:%s1984] %v2059
                %v2061 = vld [vmem:[%s1993 + $0x108] sm:%s1984]
                %2062 = vst [vmem:[%s1994 + $0x108] sm:%s1984] %v2061
                %v2063 = vld [vmem:[%s1993 + $0x110] sm:%s1984]
                %2064 = vst [vmem:[%s1994 + $0x110] sm:%s1984] %v2063
                %v2065 = vld [vmem:[%s1993 + $0x118] sm:%s1984]
                %2066 = vst [vmem:[%s1994 + $0x118] sm:%s1984] %v2065
                %v2067 = vld [vmem:[%s1993 + $0x120] sm:%s1984]
                %2068 = vst [vmem:[%s1994 + $0x120] sm:%s1984] %v2067
                %v2069 = vld [vmem:[%s1993 + $0x128] sm:%s1984]
                %2070 = vst [vmem:[%s1994 + $0x128] sm:%s1984] %v2069
                %v2071 = vld [vmem:[%s1993 + $0x130] sm:%s1984]
                %2072 = vst [vmem:[%s1994 + $0x130] sm:%s1984] %v2071
                %v2073 = vld [vmem:[%s1993 + $0x138] sm:%s1984]
                %2074 = vst [vmem:[%s1994 + $0x138] sm:%s1984] %v2073
                %v2075 = vld [vmem:[%s1993 + $0x140] sm:%s1984]
                %2076 = vst [vmem:[%s1994 + $0x140] sm:%s1984] %v2075
                %v2077 = vld [vmem:[%s1993 + $0x148] sm:%s1984]
                %2078 = vst [vmem:[%s1994 + $0x148] sm:%s1984] %v2077
                %v2079 = vld [vmem:[%s1993 + $0x150] sm:%s1984]
                %2080 = vst [vmem:[%s1994 + $0x150] sm:%s1984] %v2079
                %v2081 = vld [vmem:[%s1993 + $0x158] sm:%s1984]
                %2082 = vst [vmem:[%s1994 + $0x158] sm:%s1984] %v2081
                %v2083 = vld [vmem:[%s1993 + $0x160] sm:%s1984]
                %2084 = vst [vmem:[%s1994 + $0x160] sm:%s1984] %v2083
                %v2085 = vld [vmem:[%s1993 + $0x168] sm:%s1984]
                %2086 = vst [vmem:[%s1994 + $0x168] sm:%s1984] %v2085
                %v2087 = vld [vmem:[%s1993 + $0x170] sm:%s1984]
                %2088 = vst [vmem:[%s1994 + $0x170] sm:%s1984] %v2087
                %v2089 = vld [vmem:[%s1993 + $0x178] sm:%s1984]
                %2090 = vst [vmem:[%s1994 + $0x178] sm:%s1984] %v2089
                %v2091 = vld [vmem:[%s1993 + $0x180] sm:%s1984]
                %2092 = vst [vmem:[%s1994 + $0x180] sm:%s1984] %v2091
                %v2093 = vld [vmem:[%s1993 + $0x188] sm:%s1984]
                %2094 = vst [vmem:[%s1994 + $0x188] sm:%s1984] %v2093
                %v2095 = vld [vmem:[%s1993 + $0x190] sm:%s1984]
                %2096 = vst [vmem:[%s1994 + $0x190] sm:%s1984] %v2095
                %v2097 = vld [vmem:[%s1993 + $0x198] sm:%s1984]
                %2098 = vst [vmem:[%s1994 + $0x198] sm:%s1984] %v2097
                %v2099 = vld [vmem:[%s1993 + $0x1a0] sm:%s1984]
                %2100 = vst [vmem:[%s1994 + $0x1a0] sm:%s1984] %v2099
                %v2101 = vld [vmem:[%s1993 + $0x1a8] sm:%s1984]
                %2102 = vst [vmem:[%s1994 + $0x1a8] sm:%s1984] %v2101
                %v2103 = vld [vmem:[%s1993 + $0x1b0] sm:%s1984]
                %2104 = vst [vmem:[%s1994 + $0x1b0] sm:%s1984] %v2103
                %v2105 = vld [vmem:[%s1993 + $0x1b8] sm:%s1984]
                %2106 = vst [vmem:[%s1994 + $0x1b8] sm:%s1984] %v2105
                %v2107 = vld [vmem:[%s1993 + $0x1c0] sm:%s1984]
                %2108 = vst [vmem:[%s1994 + $0x1c0] sm:%s1984] %v2107
                %v2109 = vld [vmem:[%s1993 + $0x1c8] sm:%s1984]
                %2110 = vst [vmem:[%s1994 + $0x1c8] sm:%s1984] %v2109
                %v2111 = vld [vmem:[%s1993 + $0x1d0] sm:%s1984]
                %2112 = vst [vmem:[%s1994 + $0x1d0] sm:%s1984] %v2111
                %v2113 = vld [vmem:[%s1993 + $0x1d8] sm:%s1984]
                %2114 = vst [vmem:[%s1994 + $0x1d8] sm:%s1984] %v2113
                %v2115 = vld [vmem:[%s1993 + $0x1e0] sm:%s1984]
                %2116 = vst [vmem:[%s1994 + $0x1e0] sm:%s1984] %v2115
                %v2117 = vld [vmem:[%s1993 + $0x1e8] sm:%s1984]
                %2118 = vst [vmem:[%s1994 + $0x1e8] sm:%s1984] %v2117
                %v2119 = vld [vmem:[%s1993 + $0x1f0] sm:%s1984]
                %2120 = vst [vmem:[%s1994 + $0x1f0] sm:%s1984] %v2119
                %v2121 = vld [vmem:[%s1993 + $0x1f8] sm:%s1984]
                %2122 = vst [vmem:[%s1994 + $0x1f8] sm:%s1984] %v2121
                %s2123 = sadd.s32 1, %s1992
                %p2124 = scmp.ge.s32.totalorder %s2123, %s1985
                %s2125 = scalar_select %p2124, 0, %s2123
                %s2126 = smul.u32 %s2125, 512
                %s2127 = smul.u32 %s2125, 512
                %s2128 = scalar_lea.vmem %s1964, %s2126 [#allocation2]
                %s2129 = scalar_lea.vmem %s1975, %s2127
              $region69: #{actor_forward.1} parent=63 // loop_footer
                %s1989 = sadd.s32 %s1987, 1
              $region70: #{actor_forward.1} parent=63 // loop_footer_branch
                %1986 = sbr.rel target = $region66
              $region71: #{actor_forward.1} parent=63 // loop_exit
                _
              %s2130 = sshrl.u32 %s1971, 6
              %s2131 = sand.u32 %s1971, 63
              %s2132 = smul.u32 %s2130, 64
              %s2133 = smul.u32 8, %s2132
              %s2134 = scalar_lea.vmem %s1964, %s2133 [#allocation2]
              %s2135 = smul.u32 8, %s2132
              %s2136 = scalar_lea.vmem %s1975, %s2135
              // While loop
              $region72: #{actor_forward.1} parent=63 // loop_pre_header
                _
              $region73: #{actor_forward.1} parent=63 // loop_header
                %s2138 = sphi 0, %s2140
                %p2139 = scmp.ge.s32.totalorder %s2138, %s2131
                %s2143 = sphi 0, %s2150
                %s2144 = sphi %s2134, %s2153
                %s2145 = sphi %s2136, %s2154
              $region74: #{actor_forward.1} parent=63 // loop_header_branch
                %2142 = sbr.rel (%p2139) target = $region78
              $region75: #{actor_forward.1} parent=63 // loop_body
                %v2146 = vld [vmem:[%s2144] sm:%s1984]
                %2147 = vst [vmem:[%s2145] sm:%s1984] %v2146
                %s2148 = sadd.s32 1, %s2143
                %p2149 = scmp.ge.s32.totalorder %s2148, %s2131
                %s2150 = scalar_select %p2149, 0, %s2148
                %s2151 = smul.u32 %s2150, 8
                %s2152 = smul.u32 %s2150, 8
                %s2153 = scalar_lea.vmem %s2134, %s2151 [#allocation2]
                %s2154 = scalar_lea.vmem %s2136, %s2152
              $region76: #{actor_forward.1} parent=63 // loop_footer
                %s2140 = sadd.s32 %s2138, 1
              $region77: #{actor_forward.1} parent=63 // loop_footer_branch
                %2137 = sbr.rel target = $region73
              $region78: #{actor_forward.1} parent=63 // loop_exit
                _
            $region64: #{actor_forward.1} parent=55 // pred_fallthru
              _
          $region56: #{actor_forward.1} parent=51 // pred_fallthru
            _
          %2329 = vnop
        $region52: #{actor_forward.1} parent=47 // pred_fallthru
          _
      $region48: #{actor_forward.1} parent=5 // pred_fallthru
        _
      %p2330 = scmp.le.s32.totalorder 2, %s13
      // Predicated region
      $region101: #{actor_forward.1} parent=5 // pred_check
        %p2331 = pneg %p2330
      $region102: #{actor_forward.1} parent=5 // pred_check_branch
        %2333 = sbr.rel (%p2331) target = $region104
      $region103: #{actor_forward.1} parent=5 // pred_region
        %s2334 = ssub.s32 %s13, 2
        // Predicated region
        $region105: #{actor_forward.1} parent=103 // pred_check
          %p2335 = pneg %p194
        $region106: #{actor_forward.1} parent=103 // pred_check_branch
          %2337 = sbr.rel (%p2335) target = $region108
        $region107: #{actor_forward.1} parent=103 // pred_region
          %s2338 = sand.u32 %s179, 1
          %s2339 = sand.u32 %s179, 1
          %s2340 = smul.addr %s2339, 512
          %s2341 = scalar_lea.vmem [#allocation2], %s2340
        $region108: #{actor_forward.1} parent=103 // pred_fallthru
          _
      $region104: #{actor_forward.1} parent=5 // pred_fallthru
        _
    $region6: #{actor_forward.1} parent=1 // loop_footer
      %s17 = sadd.s32 1, %s13
    $region7: #{actor_forward.1} parent=1 // loop_footer_branch
      %12 = sbr.rel target = $region3
    $region8: #{actor_forward.1} parent=1 // loop_exit
      _

</llo_original>
